<compile_context>
chip_gen: v5e
topology: v5e:2x2
jax: 0.10.0
libtpu: 0.0.40
codegen_flags: <defaults>
</compile_context>

<pallas_src>
import functools

import jax
import jax.numpy as jnp
import numpy as np
from jax import lax
from jax.experimental import pallas as pl
from jax.experimental.pallas import tpu as pltpu


# ------------------------------ kernel bodies ------------------------------ #
def _se_gate(x, w1t, b1, w2, b2):
    # x: (C, HW); w1t: (C, Cr); b1: (1, Cr); w2: (C, Cr); b2: (C, 1)
    pooled = jnp.mean(x, axis=-1, keepdims=True)              # AdaptiveAvgPool2d -> (C, 1)
    h = jnp.sum(w1t * pooled, axis=0, keepdims=True) + b1     # 1x1 conv C -> C//16
    h = jnp.maximum(h, 0.0)                                   # ReLU
    g = jnp.sum(w2 * h, axis=1, keepdims=True) + b2           # 1x1 conv C//16 -> C
    return jax.nn.sigmoid(g)                                  # Sigmoid -> (C, 1)


def _make_fused_kernel(C, H, W, pad):
    """One batch tile:  x*SE(x) + x2*SE(x2)  with  x2 = |convX(x)| + |convY(x)|."""
    HW = H * W

    def kernel(xp_ref, w1t_ref, b1_ref, w2_ref, b2_ref, wflat_ref, bxy_ref, o_ref):
        w1t = w1t_ref[...]
        b1 = b1_ref[...]
        w2 = w2_ref[...]
        b2 = b2_ref[...]

        # ---- branch 1: SE(x) * x ------------------------------------------
        x = xp_ref[0, :, pad:pad + HW]                        # (C, HW) interior window
        out1 = x * _se_gate(x, w1t, b1, w2, b2)

        # ---- branch 2: 3x3 conv via an in-VMEM im2col + one MXU dot ---------
        # tap(dh, dw)[c, h*W + w] = x[c, h+dh, w+dw]  (0 outside the image).
        # pad = W+1 zeros on each side of the flat row already make every
        # vertically out-of-range tap read zeros; only horizontal wrap at the
        # left/right image edge (dw = +/-1) must be masked.
        idx = lax.broadcasted_iota(jnp.int32, (1, HW), 1)
        w_pos = idx % W
        mask_l = w_pos >= 1                                    # valid where dw == -1
        mask_r = w_pos <= W - 2                                # valid where dw == +1

        taps = []
        for kh in range(3):
            for kw in range(3):
                dh, dw = kh - 1, kw - 1
                start = pad + dh * W + dw
                tap = xp_ref[0, :, start:start + HW]           # shifted window (C, HW)
                if dw == -1:
                    tap = jnp.where(mask_l, tap, 0.0)
                elif dw == 1:
                    tap = jnp.where(mask_r, tap, 0.0)
                taps.append(tap)
        col = jnp.concatenate(taps, axis=0)                    # (9C, HW) im2col slab

        gxy = jnp.dot(wflat_ref[...], col,                     # (2C, 9C) @ (9C, HW) on MXU
                      preferred_element_type=jnp.float32)
        gxy = gxy + bxy_ref[...]                               # per-channel conv bias
        x2 = jnp.abs(gxy[:C]) + jnp.abs(gxy[C:])               # |convX| + |convY|

        # ---- branch 2 SE, modulation and fused residual add ------------------
        o_ref[0] = (out1 + x2 * _se_gate(x2, w1t, b1, w2, b2)).astype(o_ref.dtype)

    return kernel


def _make_se_only_kernel():
    # sobel=False path of the module: out = x * SE(x)
    def kernel(x_ref, w1t_ref, b1_ref, w2_ref, b2_ref, o_ref):
        x = x_ref[0]
        g = _se_gate(x, w1t_ref[...], b1_ref[...], w2_ref[...], b2_ref[...])
        o_ref[0] = (x * g).astype(o_ref.dtype)
    return kernel


# --------------------------------- wrapper --------------------------------- #
def res_grad_attention(x, p, sobel=True):
    B, C, H, W = x.shape
    HW = H * W
    Cr = p["se_w1"].shape[0]

    w1t = p["se_w1"].T                        # (C, Cr)
    b1r = p["se_b1"].reshape(1, Cr)
    w2 = p["se_w2"]                           # (C, Cr)
    b2r = p["se_b2"].reshape(C, 1)

    se_specs = [
        pl.BlockSpec((C, Cr), lambda b: (0, 0)),
        pl.BlockSpec((1, Cr), lambda b: (0, 0)),
        pl.BlockSpec((C, Cr), lambda b: (0, 0)),
        pl.BlockSpec((C, 1), lambda b: (0, 0)),
    ]
    out_spec = pl.BlockSpec((1, C, HW), lambda b: (b, 0, 0))
    out_shape = jax.ShapeDtypeStruct((B, C, HW), x.dtype)
    cp = pltpu.CompilerParams(dimension_semantics=("parallel",))

    if not sobel:
        out_flat = pl.pallas_call(
            _make_se_only_kernel(),
            out_shape=out_shape,
            grid=(B,),
            in_specs=[out_spec] + se_specs,
            out_specs=out_spec,
            compiler_params=cp,
        )(x.reshape(B, C, HW), w1t, b1r, w2, b2r)
        return out_flat.reshape(B, C, H, W)

    # Zero-pad the flattened spatial axis by W+1 on both sides so every 3x3 tap
    # is an in-bounds static window (replaces any XLA-side 9x im2col HBM tensor)
    # and all vertical out-of-bounds positions already read zeros.
    pad = W + 1
    xp = jnp.pad(x.reshape(B, C, HW), ((0, 0), (0, 0), (pad, pad)))

    # convX / convY weights concatenated row-wise and flattened to the im2col
    # contraction layout:  wflat[m, (kh*3 + kw)*C + c] = w[m, c, kh, kw].
    wxy = jnp.concatenate([p["wX"], p["wY"]], axis=0)          # (2C, C, 3, 3)
    wflat = jnp.transpose(wxy, (0, 2, 3, 1)).reshape(2 * C, 9 * C)
    bxy = jnp.concatenate([p["bx"], p["by"]], axis=0).reshape(2 * C, 1)

    in_specs = (
        [pl.BlockSpec((1, C, HW + 2 * pad), lambda b: (b, 0, 0))]
        + se_specs
        + [pl.BlockSpec((2 * C, 9 * C), lambda b: (0, 0)),
           pl.BlockSpec((2 * C, 1), lambda b: (0, 0))]
    )
    out_flat = pl.pallas_call(
        _make_fused_kernel(C, H, W, pad),
        out_shape=out_shape,
        grid=(B,),
        in_specs=in_specs,
        out_specs=out_spec,
        compiler_params=cp,
    )(xp, w1t, b1r, w2, b2r, wflat, bxy)
    # TODO(synk): for large H*W on v7x, add an HW grid axis (with a two-pass SE
    # mean) and size tiles for the 64 MiB VMEM; unnecessary at these shapes.
    return out_flat.reshape(B, C, H, W)


# ------------------------- deterministic parameters ------------------------- #
def init_params(key, C):
    Cr = C // 16
    k = jax.random.split(key, 6)
    sobel = jnp.array([[1.0, 0.0, -1.0], [2.0, 0.0, -2.0], [1.0, 0.0, -1.0]], jnp.float32)
    # SE 1x1 convs: PyTorch Conv2d default uniform(-1/sqrt(fan_in), 1/sqrt(fan_in))
    lim1 = 1.0 / np.sqrt(C)
    lim2 = 1.0 / np.sqrt(Cr)
    se_w1 = jax.random.uniform(k[0], (Cr, C), jnp.float32, -lim1, lim1)
    se_b1 = jax.random.uniform(k[1], (Cr,), jnp.float32, -lim1, lim1)
    se_w2 = jax.random.uniform(k[2], (C, Cr), jnp.float32, -lim2, lim2)
    se_b2 = jax.random.uniform(k[3], (C,), jnp.float32, -lim2, lim2)
    # SobelNet: weight.data.copy_(sobel) broadcasts the 3x3 filter over every
    # (out, in) channel pair; biases keep their default Conv2d init.
    limc = 1.0 / np.sqrt(C * 9)
    wX = jnp.broadcast_to(sobel, (C, C, 3, 3)).astype(jnp.float32)
    wY = jnp.broadcast_to(sobel.T, (C, C, 3, 3)).astype(jnp.float32)
    bx = jax.random.uniform(k[4], (C,), jnp.float32, -limc, limc)
    by = jax.random.uniform(k[5], (C,), jnp.float32, -limc, limc)
    return dict(se_w1=se_w1, se_b1=se_b1, se_w2=se_w2, se_b2=se_b2,
                wX=wX, wY=wY, bx=bx, by=by)


# -------------------------------- reference --------------------------------- #
def reference(x, p):
    def se(z):
        pooled = jnp.mean(z, axis=(2, 3), keepdims=True)
        h = jnp.einsum("oc,bcij->boij", p["se_w1"], pooled) + p["se_b1"][None, :, None, None]
        h = jnp.maximum(h, 0.0)
        g = jnp.einsum("oc,bcij->boij", p["se_w2"], h) + p["se_b2"][None, :, None, None]
        return jax.nn.sigmoid(g)

    out1 = x * se(x)
    dn = ("NCHW", "OIHW", "NCHW")
    gx = lax.conv_general_dilated(x, p["wX"], (1, 1), [(1, 1), (1, 1)],
                                  dimension_numbers=dn) + p["bx"][None, :, None, None]
    gy = lax.conv_general_dilated(x, p["wY"], (1, 1), [(1, 1), (1, 1)],
                                  dimension_numbers=dn) + p["by"][None, :, None, None]
    x2 = jnp.abs(gx) + jnp.abs(gy)
    out2 = x2 * se(x2)
    return out1 + out2


if __name__ == "__main__":
    B, C, H, W = 2, 32, 16, 16        # C >= 16 so the SE bottleneck C // 16 >= 1
    key = jax.random.PRNGKey(0)
    kx, kp = jax.random.split(key)
    x = jax.random.normal(kx, (B, C, H, W), jnp.float32)
    params = init_params(kp, C)

    fwd = jax.jit(functools.partial(res_grad_attention, sobel=True))
    out = jax.block_until_ready(fwd(x, params))
    assert out.shape == (B, C, H, W)

    ref = reference(x, params)
    if not jnp.allclose(out, ref, atol=1e-3, rtol=1e-3):
        raise AssertionError(f"mismatch: max abs diff = {jnp.max(jnp.abs(out - ref))}")
    print("KERNEL_OK")
</pallas_src>

<mosaic_0001>
module attributes {stable_mosaic.version = 11 : i64} {
  func.func @kernel(%arg0: i32, %arg1: memref<1x32x290xf32, #tpu.memory_space<vmem>>, %arg2: memref<32x2xf32, #tpu.memory_space<vmem>>, %arg3: memref<1x2xf32, #tpu.memory_space<vmem>>, %arg4: memref<32x2xf32, #tpu.memory_space<vmem>>, %arg5: memref<32x1xf32, #tpu.memory_space<vmem>>, %arg6: memref<64x288xf32, #tpu.memory_space<vmem>>, %arg7: memref<64x1xf32, #tpu.memory_space<vmem>>, %arg8: memref<1x32x256xf32, #tpu.memory_space<vmem>>) attributes {dimension_semantics = [#tpu.dimension_semantics<parallel>], iteration_bounds = array<i64: 2>, scalar_prefetch = 0 : i64, scratch_operands = 0 : i64, tpu.core_type = #tpu.core_type<tc>, window_params = [{transform_indices = @transform_0, window_bounds = array<i64: 1, 32, 290>}, {pipeline_mode = #tpu.pipeline_mode<synchronous>, transform_indices = @transform_1, window_bounds = array<i64: 32, 2>}, {pipeline_mode = #tpu.pipeline_mode<synchronous>, transform_indices = @transform_2, window_bounds = array<i64: 1, 2>}, {pipeline_mode = #tpu.pipeline_mode<synchronous>, transform_indices = @transform_3, window_bounds = array<i64: 32, 2>}, {pipeline_mode = #tpu.pipeline_mode<synchronous>, transform_indices = @transform_4, window_bounds = array<i64: 32, 1>}, {pipeline_mode = #tpu.pipeline_mode<synchronous>, transform_indices = @transform_5, window_bounds = array<i64: 64, 288>}, {pipeline_mode = #tpu.pipeline_mode<synchronous>, transform_indices = @transform_6, window_bounds = array<i64: 64, 1>}, {transform_indices = @transform_7, window_bounds = array<i64: 1, 32, 256>}]} {
    %c0 = arith.constant 0 : index
    %c0_0 = arith.constant 0 : index
    %0 = vector.load %arg2[%c0, %c0_0] : memref<32x2xf32, #tpu.memory_space<vmem>>, vector<32x2xf32>
    %c0_1 = arith.constant 0 : index
    %c0_2 = arith.constant 0 : index
    %1 = vector.load %arg3[%c0_1, %c0_2] : memref<1x2xf32, #tpu.memory_space<vmem>>, vector<1x2xf32>
    %c0_3 = arith.constant 0 : index
    %c0_4 = arith.constant 0 : index
    %2 = vector.load %arg4[%c0_3, %c0_4] : memref<32x2xf32, #tpu.memory_space<vmem>>, vector<32x2xf32>
    %c0_5 = arith.constant 0 : index
    %c0_6 = arith.constant 0 : index
    %3 = vector.load %arg5[%c0_5, %c0_6] : memref<32x1xf32, #tpu.memory_space<vmem>>, vector<32x1xf32>
    %c0_7 = arith.constant 0 : index
    %c0_8 = arith.constant 0 : index
    %c17 = arith.constant 17 : index
    %4 = vector.load %arg1[%c0_7, %c0_8, %c17] : memref<1x32x290xf32, #tpu.memory_space<vmem>>, vector<1x32x256xf32>
    %5 = vector.shape_cast %4 : vector<1x32x256xf32> to vector<32x256xf32>
    %cst = arith.constant dense<0.000000e+00> : vector<32xf32>
    %6 = vector.multi_reduction <add>, %5, %cst [1] : vector<32x256xf32> to vector<32xf32>
    %7 = vector.shape_cast %6 : vector<32xf32> to vector<32x1xf32>
    %cst_9 = arith.constant 2.560000e+02 : f32
    %8 = vector.broadcast %cst_9 : f32 to vector<32x1xf32>
    %9 = arith.divf %7, %8 : vector<32x1xf32>
    %10 = vector.broadcast %9 : vector<32x1xf32> to vector<32x2xf32>
    %11 = arith.mulf %0, %10 : vector<32x2xf32>
    %cst_10 = arith.constant dense<0.000000e+00> : vector<2xf32>
    %12 = vector.multi_reduction <add>, %11, %cst_10 [0] : vector<32x2xf32> to vector<2xf32>
    %13 = vector.shape_cast %12 : vector<2xf32> to vector<1x2xf32>
    %14 = arith.addf %13, %1 : vector<1x2xf32>
    %cst_11 = arith.constant 0.000000e+00 : f32
    %15 = vector.broadcast %cst_11 : f32 to vector<1x2xf32>
    %16 = arith.maximumf %14, %15 : vector<1x2xf32>
    %17 = vector.broadcast %16 : vector<1x2xf32> to vector<32x2xf32>
    %18 = arith.mulf %2, %17 : vector<32x2xf32>
    %cst_12 = arith.constant dense<0.000000e+00> : vector<32xf32>
    %19 = vector.multi_reduction <add>, %18, %cst_12 [1] : vector<32x2xf32> to vector<32xf32>
    %20 = vector.shape_cast %19 : vector<32xf32> to vector<32x1xf32>
    %21 = arith.addf %20, %3 : vector<32x1xf32>
    %22 = arith.negf %21 : vector<32x1xf32>
    %23 = math.exp %22 : vector<32x1xf32>
    %cst_13 = arith.constant 1.000000e+00 : f32
    %24 = vector.broadcast %cst_13 : f32 to vector<32x1xf32>
    %25 = arith.addf %24, %23 : vector<32x1xf32>
    %26 = arith.divf %24, %25 : vector<32x1xf32>
    %27 = vector.broadcast %26 : vector<32x1xf32> to vector<32x256xf32>
    %28 = arith.mulf %5, %27 : vector<32x256xf32>
    %29 = tpu.iota {dimensions = array<i32: 1>} : vector<1x256xi32>
    %c16_i32 = arith.constant 16 : i32
    %c0_i32 = arith.constant 0 : i32
    %30 = arith.cmpi eq, %c16_i32, %c0_i32 : i32
    %c1_i32 = arith.constant 1 : i32
    %31 = arith.select %30, %c1_i32, %c16_i32 : i32
    %32 = vector.broadcast %31 : i32 to vector<1x256xi32>
    %33 = arith.remsi %29, %32 : vector<1x256xi32>
    %c0_i32_14 = arith.constant 0 : i32
    %34 = vector.broadcast %c0_i32_14 : i32 to vector<1x256xi32>
    %35 = arith.cmpi ne, %33, %34 : vector<1x256xi32>
    %c0_i32_15 = arith.constant 0 : i32
    %36 = vector.broadcast %c0_i32_15 : i32 to vector<1x256xi32>
    %37 = arith.cmpi slt, %33, %36 : vector<1x256xi32>
    %c0_i32_16 = arith.constant 0 : i32
    %38 = arith.cmpi slt, %31, %c0_i32_16 : i32
    %39 = vector.broadcast %38 : i1 to vector<1x256xi1>
    %40 = vector.broadcast %39 : vector<1x256xi1> to vector<1x256xi1>
    %41 = arith.xori %37, %40 : vector<1x256xi1>
    %42 = arith.andi %41, %35 : vector<1x256xi1>
    %43 = vector.broadcast %31 : i32 to vector<1x256xi32>
    %44 = arith.addi %33, %43 : vector<1x256xi32>
    %45 = arith.select %42, %44, %33 : vector<1x256xi1>, vector<1x256xi32>
    %c1_i32_17 = arith.constant 1 : i32
    %46 = vector.broadcast %c1_i32_17 : i32 to vector<1x256xi32>
    %47 = arith.cmpi sge, %45, %46 : vector<1x256xi32>
    %c14_i32 = arith.constant 14 : i32
    %48 = vector.broadcast %c14_i32 : i32 to vector<1x256xi32>
    %49 = arith.cmpi sle, %45, %48 : vector<1x256xi32>
    %c0_18 = arith.constant 0 : index
    %c0_19 = arith.constant 0 : index
    %c0_20 = arith.constant 0 : index
    %50 = vector.load %arg1[%c0_18, %c0_19, %c0_20] : memref<1x32x290xf32, #tpu.memory_space<vmem>>, vector<1x32x256xf32>
    %51 = vector.shape_cast %50 : vector<1x32x256xf32> to vector<32x256xf32>
    %cst_21 = arith.constant 0.000000e+00 : f32
    %52 = vector.shape_cast %47 : vector<1x256xi1> to vector<1x256xi1>
    %53 = vector.broadcast %52 : vector<1x256xi1> to vector<32x256xi1>
    %54 = vector.broadcast %cst_21 : f32 to vector<32x256xf32>
    %55 = arith.select %53, %51, %54 : vector<32x256xi1>, vector<32x256xf32>
    %c0_22 = arith.constant 0 : index
    %c0_23 = arith.constant 0 : index
    %c1 = arith.constant 1 : index
    %56 = vector.load %arg1[%c0_22, %c0_23, %c1] : memref<1x32x290xf32, #tpu.memory_space<vmem>>, vector<1x32x256xf32>
    %57 = vector.shape_cast %56 : vector<1x32x256xf32> to vector<32x256xf32>
    %c0_24 = arith.constant 0 : index
    %c0_25 = arith.constant 0 : index
    %c2 = arith.constant 2 : index
    %58 = vector.load %arg1[%c0_24, %c0_25, %c2] : memref<1x32x290xf32, #tpu.memory_space<vmem>>, vector<1x32x256xf32>
    %59 = vector.shape_cast %58 : vector<1x32x256xf32> to vector<32x256xf32>
    %cst_26 = arith.constant 0.000000e+00 : f32
    %60 = vector.shape_cast %49 : vector<1x256xi1> to vector<1x256xi1>
    %61 = vector.broadcast %60 : vector<1x256xi1> to vector<32x256xi1>
    %62 = vector.broadcast %cst_26 : f32 to vector<32x256xf32>
    %63 = arith.select %61, %59, %62 : vector<32x256xi1>, vector<32x256xf32>
    %c0_27 = arith.constant 0 : index
    %c0_28 = arith.constant 0 : index
    %c16 = arith.constant 16 : index
    %64 = vector.load %arg1[%c0_27, %c0_28, %c16] : memref<1x32x290xf32, #tpu.memory_space<vmem>>, vector<1x32x256xf32>
    %65 = vector.shape_cast %64 : vector<1x32x256xf32> to vector<32x256xf32>
    %cst_29 = arith.constant 0.000000e+00 : f32
    %66 = vector.shape_cast %47 : vector<1x256xi1> to vector<1x256xi1>
    %67 = vector.broadcast %66 : vector<1x256xi1> to vector<32x256xi1>
    %68 = vector.broadcast %cst_29 : f32 to vector<32x256xf32>
    %69 = arith.select %67, %65, %68 : vector<32x256xi1>, vector<32x256xf32>
    %c0_30 = arith.constant 0 : index
    %c0_31 = arith.constant 0 : index
    %c17_32 = arith.constant 17 : index
    %70 = vector.load %arg1[%c0_30, %c0_31, %c17_32] : memref<1x32x290xf32, #tpu.memory_space<vmem>>, vector<1x32x256xf32>
    %71 = vector.shape_cast %70 : vector<1x32x256xf32> to vector<32x256xf32>
    %c0_33 = arith.constant 0 : index
    %c0_34 = arith.constant 0 : index
    %c18 = arith.constant 18 : index
    %72 = vector.load %arg1[%c0_33, %c0_34, %c18] : memref<1x32x290xf32, #tpu.memory_space<vmem>>, vector<1x32x256xf32>
    %73 = vector.shape_cast %72 : vector<1x32x256xf32> to vector<32x256xf32>
    %cst_35 = arith.constant 0.000000e+00 : f32
    %74 = vector.shape_cast %49 : vector<1x256xi1> to vector<1x256xi1>
    %75 = vector.broadcast %74 : vector<1x256xi1> to vector<32x256xi1>
    %76 = vector.broadcast %cst_35 : f32 to vector<32x256xf32>
    %77 = arith.select %75, %73, %76 : vector<32x256xi1>, vector<32x256xf32>
    %c0_36 = arith.constant 0 : index
    %c0_37 = arith.constant 0 : index
    %c32 = arith.constant 32 : index
    %78 = vector.load %arg1[%c0_36, %c0_37, %c32] : memref<1x32x290xf32, #tpu.memory_space<vmem>>, vector<1x32x256xf32>
    %79 = vector.shape_cast %78 : vector<1x32x256xf32> to vector<32x256xf32>
    %cst_38 = arith.constant 0.000000e+00 : f32
    %80 = vector.shape_cast %47 : vector<1x256xi1> to vector<1x256xi1>
    %81 = vector.broadcast %80 : vector<1x256xi1> to vector<32x256xi1>
    %82 = vector.broadcast %cst_38 : f32 to vector<32x256xf32>
    %83 = arith.select %81, %79, %82 : vector<32x256xi1>, vector<32x256xf32>
    %c0_39 = arith.constant 0 : index
    %c0_40 = arith.constant 0 : index
    %c33 = arith.constant 33 : index
    %84 = vector.load %arg1[%c0_39, %c0_40, %c33] : memref<1x32x290xf32, #tpu.memory_space<vmem>>, vector<1x32x256xf32>
    %85 = vector.shape_cast %84 : vector<1x32x256xf32> to vector<32x256xf32>
    %c0_41 = arith.constant 0 : index
    %c0_42 = arith.constant 0 : index
    %c34 = arith.constant 34 : index
    %86 = vector.load %arg1[%c0_41, %c0_42, %c34] : memref<1x32x290xf32, #tpu.memory_space<vmem>>, vector<1x32x256xf32>
    %87 = vector.shape_cast %86 : vector<1x32x256xf32> to vector<32x256xf32>
    %cst_43 = arith.constant 0.000000e+00 : f32
    %88 = vector.shape_cast %49 : vector<1x256xi1> to vector<1x256xi1>
    %89 = vector.broadcast %88 : vector<1x256xi1> to vector<32x256xi1>
    %90 = vector.broadcast %cst_43 : f32 to vector<32x256xf32>
    %91 = arith.select %89, %87, %90 : vector<32x256xi1>, vector<32x256xf32>
    %92 = tpu.concatenate %55, %57, %63, %69, %71, %77, %83, %85, %91 in 0 : vector<32x256xf32>, vector<32x256xf32>, vector<32x256xf32>, vector<32x256xf32>, vector<32x256xf32>, vector<32x256xf32>, vector<32x256xf32>, vector<32x256xf32>, vector<32x256xf32> -> vector<288x256xf32>
    %c0_44 = arith.constant 0 : index
    %c0_45 = arith.constant 0 : index
    %93 = vector.load %arg6[%c0_44, %c0_45] : memref<64x288xf32, #tpu.memory_space<vmem>>, vector<64x288xf32>
    %cst_46 = arith.constant dense<0.000000e+00> : vector<64x256xf32>
    %94 = tpu.matmul %93, %92, %cst_46 {dimension_numbers = #tpu.dot_dimension_numbers<[1], [0], [0], [1], [0, 0, 1, 1], [], []>} : vector<64x288xf32>, vector<288x256xf32>, vector<64x256xf32> -> vector<64x256xf32>
    %c0_47 = arith.constant 0 : index
    %c0_48 = arith.constant 0 : index
    %95 = vector.load %arg7[%c0_47, %c0_48] : memref<64x1xf32, #tpu.memory_space<vmem>>, vector<64x1xf32>
    %96 = vector.broadcast %95 : vector<64x1xf32> to vector<64x256xf32>
    %97 = arith.addf %94, %96 : vector<64x256xf32>
    %98 = vector.extract_strided_slice %97 {offsets = [0, 0], sizes = [32, 256], strides = [1, 1]} : vector<64x256xf32> to vector<32x256xf32>
    %99 = math.absf %98 : vector<32x256xf32>
    %100 = vector.extract_strided_slice %97 {offsets = [32, 0], sizes = [32, 256], strides = [1, 1]} : vector<64x256xf32> to vector<32x256xf32>
    %101 = math.absf %100 : vector<32x256xf32>
    %102 = arith.addf %99, %101 : vector<32x256xf32>
    %cst_49 = arith.constant dense<0.000000e+00> : vector<32xf32>
    %103 = vector.multi_reduction <add>, %102, %cst_49 [1] : vector<32x256xf32> to vector<32xf32>
    %104 = vector.shape_cast %103 : vector<32xf32> to vector<32x1xf32>
    %cst_50 = arith.constant 2.560000e+02 : f32
    %105 = vector.broadcast %cst_50 : f32 to vector<32x1xf32>
    %106 = arith.divf %104, %105 : vector<32x1xf32>
    %107 = vector.broadcast %106 : vector<32x1xf32> to vector<32x2xf32>
    %108 = arith.mulf %0, %107 : vector<32x2xf32>
    %cst_51 = arith.constant dense<0.000000e+00> : vector<2xf32>
    %109 = vector.multi_reduction <add>, %108, %cst_51 [0] : vector<32x2xf32> to vector<2xf32>
    %110 = vector.shape_cast %109 : vector<2xf32> to vector<1x2xf32>
    %111 = arith.addf %110, %1 : vector<1x2xf32>
    %cst_52 = arith.constant 0.000000e+00 : f32
    %112 = vector.broadcast %cst_52 : f32 to vector<1x2xf32>
    %113 = arith.maximumf %111, %112 : vector<1x2xf32>
    %114 = vector.broadcast %113 : vector<1x2xf32> to vector<32x2xf32>
    %115 = arith.mulf %2, %114 : vector<32x2xf32>
    %cst_53 = arith.constant dense<0.000000e+00> : vector<32xf32>
    %116 = vector.multi_reduction <add>, %115, %cst_53 [1] : vector<32x2xf32> to vector<32xf32>
    %117 = vector.shape_cast %116 : vector<32xf32> to vector<32x1xf32>
    %118 = arith.addf %117, %3 : vector<32x1xf32>
    %119 = arith.negf %118 : vector<32x1xf32>
    %120 = math.exp %119 : vector<32x1xf32>
    %cst_54 = arith.constant 1.000000e+00 : f32
    %121 = vector.broadcast %cst_54 : f32 to vector<32x1xf32>
    %122 = arith.addf %121, %120 : vector<32x1xf32>
    %123 = arith.divf %121, %122 : vector<32x1xf32>
    %124 = vector.broadcast %123 : vector<32x1xf32> to vector<32x256xf32>
    %125 = arith.mulf %102, %124 : vector<32x256xf32>
    %126 = arith.addf %28, %125 : vector<32x256xf32>
    %c0_55 = arith.constant 0 : index
    %c0_56 = arith.constant 0 : index
    %c0_57 = arith.constant 0 : index
    %127 = vector.load %arg8[%c0_55, %c0_56, %c0_57] : memref<1x32x256xf32, #tpu.memory_space<vmem>>, vector<1x32x256xf32>
    %128 = vector.shape_cast %127 : vector<1x32x256xf32> to vector<32x256xf32>
    %129 = vector.shape_cast %126 : vector<32x256xf32> to vector<1x32x256xf32>
    tpu.vector_store %arg8[%c0_55, %c0_56, %c0_57], %129 {strides = array<i32>} : memref<1x32x256xf32, #tpu.memory_space<vmem>>, vector<1x32x256xf32>,
    return
  }
  func.func @transform_0(%arg0: i32) -> (i32, i32, i32) {
    %c0_i32 = arith.constant 0 : i32
    %c0_i32_0 = arith.constant 0 : i32
    %c0_i32_1 = arith.constant 0 : i32
    return %arg0, %c0_i32, %c0_i32_0 : i32, i32, i32
  }
  func.func @transform_1(%arg0: i32) -> (i32, i32) {
    %c0_i32 = arith.constant 0 : i32
    %c0_i32_0 = arith.constant 0 : i32
    %c0_i32_1 = arith.constant 0 : i32
    return %c0_i32, %c0_i32_0 : i32, i32
  }
  func.func @transform_2(%arg0: i32) -> (i32, i32) {
    %c0_i32 = arith.constant 0 : i32
    %c0_i32_0 = arith.constant 0 : i32
    %c0_i32_1 = arith.constant 0 : i32
    return %c0_i32, %c0_i32_0 : i32, i32
  }
  func.func @transform_3(%arg0: i32) -> (i32, i32) {
    %c0_i32 = arith.constant 0 : i32
    %c0_i32_0 = arith.constant 0 : i32
    %c0_i32_1 = arith.constant 0 : i32
    return %c0_i32, %c0_i32_0 : i32, i32
  }
  func.func @transform_4(%arg0: i32) -> (i32, i32) {
    %c0_i32 = arith.constant 0 : i32
    %c0_i32_0 = arith.constant 0 : i32
    %c0_i32_1 = arith.constant 0 : i32
    return %c0_i32, %c0_i32_0 : i32, i32
  }
  func.func @transform_5(%arg0: i32) -> (i32, i32) {
    %c0_i32 = arith.constant 0 : i32
    %c0_i32_0 = arith.constant 0 : i32
    %c0_i32_1 = arith.constant 0 : i32
    return %c0_i32, %c0_i32_0 : i32, i32
  }
  func.func @transform_6(%arg0: i32) -> (i32, i32) {
    %c0_i32 = arith.constant 0 : i32
    %c0_i32_0 = arith.constant 0 : i32
    %c0_i32_1 = arith.constant 0 : i32
    return %c0_i32, %c0_i32_0 : i32, i32
  }
  func.func @transform_7(%arg0: i32) -> (i32, i32, i32) {
    %c0_i32 = arith.constant 0 : i32
    %c0_i32_0 = arith.constant 0 : i32
    %c0_i32_1 = arith.constant 0 : i32
    return %arg0, %c0_i32, %c0_i32_0 : i32, i32, i32
  }
}

</mosaic_0001>

<llo_original>
// kernel: res_grad_attention.1
$region0: #{res_grad_attention.1}
  #allocation0 [shape = 'u32[]', space=smem, size = 0x4, offset = 0x4, fixed_abs, tag = 'smem constant byte address 0x4 - core index']
  #allocation1 [shape = 'u32[72,128]{1,0:T(1,128)}', space=vmem, size = 0x9000, scoped, tag = 'internal scratch']
  %s0 = inlined_call_operand.vmem [shape: f32[2,32,290], index: 0, kind: input, shape index: {}]
  %s1 = inlined_call_operand.vmem [shape: f32[32,2], index: 1, kind: input, shape index: {}]
  %s2 = inlined_call_operand.vmem [shape: f32[1,2], index: 2, kind: input, shape index: {}]
  %s3 = inlined_call_operand.vmem [shape: f32[32,2], index: 3, kind: input, shape index: {}]
  %s4 = inlined_call_operand.vmem [shape: f32[32,1], index: 4, kind: input, shape index: {}]
  %s5 = inlined_call_operand.vmem [shape: f32[64,288], index: 5, kind: input, shape index: {}]
  %s6 = inlined_call_operand.vmem [shape: f32[64,1], index: 6, kind: input, shape index: {}]
  %s7 = inlined_call_operand.vmem [shape: f32[2,32,256], index: 7, kind: output, shape index: {}]
  %s8 = sld [smem:[#allocation0]]
  $region61: #{res_grad_attention.1} parent=0
    _
  %s10 = ssub.s32 1, %s8
  %s11 = scalar_select 0, %s10, %s8
  loop: start=0, step=1, limit=4
  $region2: #{res_grad_attention.1} parent=0 // loop_pre_header
    _
  $region3: #{res_grad_attention.1} parent=0 // loop_header
    %s13 = sphi 0, %s17
    %p14 = scmp.ge.s32.totalorder %s13, 4
    %s23 = sphi 0, %s25
    %s26 = sphi 0, %s23
    %s27 = sphi 0, %s26
    %s43 = sphi 0, %s27
    %s47 = sphi 0, %s47
    %s49 = sphi 0, %s47
    %s50 = sphi 0, %s49
    %s64 = sphi 0, %s50
    %s68 = sphi 0, %s68
    %s70 = sphi 0, %s68
    %s71 = sphi 0, %s70
    %s85 = sphi 0, %s71
    %s89 = sphi 0, %s89
    %s91 = sphi 0, %s89
    %s92 = sphi 0, %s91
    %s106 = sphi 0, %s92
    %s110 = sphi 0, %s110
    %s112 = sphi 0, %s110
    %s113 = sphi 0, %s112
    %s127 = sphi 0, %s113
    %s131 = sphi 0, %s131
    %s133 = sphi 0, %s131
    %s134 = sphi 0, %s133
    %s148 = sphi 0, %s134
    %s152 = sphi 0, %s152
    %s154 = sphi 0, %s152
    %s155 = sphi 0, %s154
    %s169 = sphi 0, %s155
    %s175 = sphi 0, %s177
    %s178 = sphi 0, %s175
    %s179 = sphi 0, %s178
    %s195 = sphi 0, %s179
  $region4: #{res_grad_attention.1} parent=0 // loop_header_branch
    %16 = sbr.rel (%p14) target = $region8
  $region5: #{res_grad_attention.1} parent=0 // loop_body
    %s18 = ssub.s32 %s13, 1
    %s19 = ssub.s32 %s13, 2
    %s20 = sadd.s32 %s13, 1
    %s21 = ssub.s32 %s13, %s20
    %p22 = scmp.eq.s32.totalorder %s21, 0
    %s24 = sadd.s32 %s23, 1
    %s25 = scalar_select %p22, %s23, %s24
    %p28 = pneg %p22
    %p29 = scmp.eq.s32.totalorder %s13, 1
    %p30 = por %p28, %p29
    %p31 = scmp.ne.s32.totalorder %s23, %s26
    %p32 = scmp.eq.s32.totalorder %s13, 0
    %p33 = por %p31, %p32
    %p34 = scmp.ne.s32.totalorder %s23, %s26
    %p35 = scmp.eq.s32.totalorder %s18, 1
    %p36 = por %p34, %p35
    %p37 = scmp.ne.s32.totalorder %s26, %s27
    %p38 = scmp.eq.s32.totalorder %s18, 0
    %p39 = por %p37, %p38
    %p40 = scmp.ne.s32.totalorder %s26, %s27
    %p41 = scmp.eq.s32.totalorder %s19, 1
    %p42 = por %p40, %p41
    %p44 = scmp.ne.s32.totalorder %s27, %s43
    %p45 = scmp.eq.s32.totalorder %s19, 0
    %p46 = por %p44, %p45
    %s48 = sadd.s32 %s47, 1
    %p51 = scmp.eq.s32.totalorder %s13, 1
    %p52 = scmp.ne.s32.totalorder %s47, %s49
    %p53 = scmp.eq.s32.totalorder %s13, 0
    %p54 = por %p52, %p53
    %p55 = scmp.ne.s32.totalorder %s47, %s49
    %p56 = scmp.eq.s32.totalorder %s18, 1
    %p57 = por %p55, %p56
    %p58 = scmp.ne.s32.totalorder %s49, %s50
    %p59 = scmp.eq.s32.totalorder %s18, 0
    %p60 = por %p58, %p59
    %p61 = scmp.ne.s32.totalorder %s49, %s50
    %p62 = scmp.eq.s32.totalorder %s19, 1
    %p63 = por %p61, %p62
    %p65 = scmp.ne.s32.totalorder %s50, %s64
    %p66 = scmp.eq.s32.totalorder %s19, 0
    %p67 = por %p65, %p66
    %s69 = sadd.s32 %s68, 1
    %p72 = scmp.eq.s32.totalorder %s13, 1
    %p73 = scmp.ne.s32.totalorder %s68, %s70
    %p74 = scmp.eq.s32.totalorder %s13, 0
    %p75 = por %p73, %p74
    %p76 = scmp.ne.s32.totalorder %s68, %s70
    %p77 = scmp.eq.s32.totalorder %s18, 1
    %p78 = por %p76, %p77
    %p79 = scmp.ne.s32.totalorder %s70, %s71
    %p80 = scmp.eq.s32.totalorder %s18, 0
    %p81 = por %p79, %p80
    %p82 = scmp.ne.s32.totalorder %s70, %s71
    %p83 = scmp.eq.s32.totalorder %s19, 1
    %p84 = por %p82, %p83
    %p86 = scmp.ne.s32.totalorder %s71, %s85
    %p87 = scmp.eq.s32.totalorder %s19, 0
    %p88 = por %p86, %p87
    %s90 = sadd.s32 %s89, 1
    %p93 = scmp.eq.s32.totalorder %s13, 1
    %p94 = scmp.ne.s32.totalorder %s89, %s91
    %p95 = scmp.eq.s32.totalorder %s13, 0
    %p96 = por %p94, %p95
    %p97 = scmp.ne.s32.totalorder %s89, %s91
    %p98 = scmp.eq.s32.totalorder %s18, 1
    %p99 = por %p97, %p98
    %p100 = scmp.ne.s32.totalorder %s91, %s92
    %p101 = scmp.eq.s32.totalorder %s18, 0
    %p102 = por %p100, %p101
    %p103 = scmp.ne.s32.totalorder %s91, %s92
    %p104 = scmp.eq.s32.totalorder %s19, 1
    %p105 = por %p103, %p104
    %p107 = scmp.ne.s32.totalorder %s92, %s106
    %p108 = scmp.eq.s32.totalorder %s19, 0
    %p109 = por %p107, %p108
    %s111 = sadd.s32 %s110, 1
    %p114 = scmp.eq.s32.totalorder %s13, 1
    %p115 = scmp.ne.s32.totalorder %s110, %s112
    %p116 = scmp.eq.s32.totalorder %s13, 0
    %p117 = por %p115, %p116
    %p118 = scmp.ne.s32.totalorder %s110, %s112
    %p119 = scmp.eq.s32.totalorder %s18, 1
    %p120 = por %p118, %p119
    %p121 = scmp.ne.s32.totalorder %s112, %s113
    %p122 = scmp.eq.s32.totalorder %s18, 0
    %p123 = por %p121, %p122
    %p124 = scmp.ne.s32.totalorder %s112, %s113
    %p125 = scmp.eq.s32.totalorder %s19, 1
    %p126 = por %p124, %p125
    %p128 = scmp.ne.s32.totalorder %s113, %s127
    %p129 = scmp.eq.s32.totalorder %s19, 0
    %p130 = por %p128, %p129
    %s132 = sadd.s32 %s131, 1
    %p135 = scmp.eq.s32.totalorder %s13, 1
    %p136 = scmp.ne.s32.totalorder %s131, %s133
    %p137 = scmp.eq.s32.totalorder %s13, 0
    %p138 = por %p136, %p137
    %p139 = scmp.ne.s32.totalorder %s131, %s133
    %p140 = scmp.eq.s32.totalorder %s18, 1
    %p141 = por %p139, %p140
    %p142 = scmp.ne.s32.totalorder %s133, %s134
    %p143 = scmp.eq.s32.totalorder %s18, 0
    %p144 = por %p142, %p143
    %p145 = scmp.ne.s32.totalorder %s133, %s134
    %p146 = scmp.eq.s32.totalorder %s19, 1
    %p147 = por %p145, %p146
    %p149 = scmp.ne.s32.totalorder %s134, %s148
    %p150 = scmp.eq.s32.totalorder %s19, 0
    %p151 = por %p149, %p150
    %s153 = sadd.s32 %s152, 1
    %p156 = scmp.eq.s32.totalorder %s13, 1
    %p157 = scmp.ne.s32.totalorder %s152, %s154
    %p158 = scmp.eq.s32.totalorder %s13, 0
    %p159 = por %p157, %p158
    %p160 = scmp.ne.s32.totalorder %s152, %s154
    %p161 = scmp.eq.s32.totalorder %s18, 1
    %p162 = por %p160, %p161
    %p163 = scmp.ne.s32.totalorder %s154, %s155
    %p164 = scmp.eq.s32.totalorder %s18, 0
    %p165 = por %p163, %p164
    %p166 = scmp.ne.s32.totalorder %s154, %s155
    %p167 = scmp.eq.s32.totalorder %s19, 1
    %p168 = por %p166, %p167
    %p170 = scmp.ne.s32.totalorder %s155, %s169
    %p171 = scmp.eq.s32.totalorder %s19, 0
    %p172 = por %p170, %p171
    %s173 = ssub.s32 %s13, %s20
    %p174 = scmp.eq.s32.totalorder %s173, 0
    %s176 = sadd.s32 %s175, 1
    %s177 = scalar_select %p174, %s175, %s176
    %p180 = pneg %p174
    %p181 = scmp.eq.s32.totalorder %s13, 1
    %p182 = por %p180, %p181
    %p183 = scmp.ne.s32.totalorder %s175, %s178
    %p184 = scmp.eq.s32.totalorder %s13, 0
    %p185 = por %p183, %p184
    %p186 = scmp.ne.s32.totalorder %s175, %s178
    %p187 = scmp.eq.s32.totalorder %s18, 1
    %p188 = por %p186, %p187
    %p189 = scmp.ne.s32.totalorder %s178, %s179
    %p190 = scmp.eq.s32.totalorder %s18, 0
    %p191 = por %p189, %p190
    %p192 = scmp.ne.s32.totalorder %s178, %s179
    %p193 = scmp.eq.s32.totalorder %s19, 1
    %p194 = por %p192, %p193
    %p196 = scmp.ne.s32.totalorder %s179, %s195
    %p197 = scmp.eq.s32.totalorder %s19, 0
    %p198 = por %p196, %p197
    %p199 = scmp.le.s32.totalorder 1, %s13
    %p200 = scmp.lt.s32.totalorder %s13, 3
    %p201 = pnand %p199, %p200
    %p202 = pneg %p201
    // Predicated region
    $region9: #{res_grad_attention.1} parent=5 // pred_check
      _
    $region10: #{res_grad_attention.1} parent=5 // pred_check_branch
      %204 = sbr.rel (%p201) target = $region12
    $region11: #{res_grad_attention.1} parent=5 // pred_region
      %s205 = ssub.s32 %s13, 1
      // Predicated region
      $region13: #{res_grad_attention.1} parent=11 // pred_check
        %p206 = pneg %p60
      $region14: #{res_grad_attention.1} parent=11 // pred_check_branch
        %208 = sbr.rel (%p206) target = $region16
      $region15: #{res_grad_attention.1} parent=11 // pred_region
        _
      $region16: #{res_grad_attention.1} parent=11 // pred_fallthru
        _
      // Predicated region
      $region17: #{res_grad_attention.1} parent=11 // pred_check
        %p209 = pneg %p81
      $region18: #{res_grad_attention.1} parent=11 // pred_check_branch
        %211 = sbr.rel (%p209) target = $region20
      $region19: #{res_grad_attention.1} parent=11 // pred_region
        _
      $region20: #{res_grad_attention.1} parent=11 // pred_fallthru
        _
      // Predicated region
      $region21: #{res_grad_attention.1} parent=11 // pred_check
        %p212 = pneg %p102
      $region22: #{res_grad_attention.1} parent=11 // pred_check_branch
        %214 = sbr.rel (%p212) target = $region24
      $region23: #{res_grad_attention.1} parent=11 // pred_region
        _
      $region24: #{res_grad_attention.1} parent=11 // pred_fallthru
        _
      // Predicated region
      $region25: #{res_grad_attention.1} parent=11 // pred_check
        %p215 = pneg %p123
      $region26: #{res_grad_attention.1} parent=11 // pred_check_branch
        %217 = sbr.rel (%p215) target = $region28
      $region27: #{res_grad_attention.1} parent=11 // pred_region
        _
      $region28: #{res_grad_attention.1} parent=11 // pred_fallthru
        _
      // Predicated region
      $region29: #{res_grad_attention.1} parent=11 // pred_check
        %p218 = pneg %p144
      $region30: #{res_grad_attention.1} parent=11 // pred_check_branch
        %220 = sbr.rel (%p218) target = $region32
      $region31: #{res_grad_attention.1} parent=11 // pred_region
        _
      $region32: #{res_grad_attention.1} parent=11 // pred_fallthru
        _
      // Predicated region
      $region33: #{res_grad_attention.1} parent=11 // pred_check
        %p221 = pneg %p165
      $region34: #{res_grad_attention.1} parent=11 // pred_check_branch
        %223 = sbr.rel (%p221) target = $region36
      $region35: #{res_grad_attention.1} parent=11 // pred_region
        _
      $region36: #{res_grad_attention.1} parent=11 // pred_fallthru
        _
    $region12: #{res_grad_attention.1} parent=5 // pred_fallthru
      _
    %p224 = scmp.lt.s32.totalorder %s13, 2
    // Predicated region
    $region37: #{res_grad_attention.1} parent=5 // pred_check
      %p225 = pneg %p224
    $region38: #{res_grad_attention.1} parent=5 // pred_check_branch
      %227 = sbr.rel (%p225) target = $region40
    $region39: #{res_grad_attention.1} parent=5 // pred_region
      // Predicated region
      $region41: #{res_grad_attention.1} parent=39 // pred_check
        %p228 = pneg %p33
      $region42: #{res_grad_attention.1} parent=39 // pred_check_branch
        %230 = sbr.rel (%p228) target = $region44
      $region43: #{res_grad_attention.1} parent=39 // pred_region
        %p231 = scmp.lt.s32.totalorder %s13, 1
        %s232 = scalar_select %p231, %s13, 1
        %s233 = smul.addr %s232, 12
        %s234 = smul.addr %s233, 8
        %s235 = scalar_lea.vmem %s0, %s234
      $region44: #{res_grad_attention.1} parent=39 // pred_fallthru
        _
    $region40: #{res_grad_attention.1} parent=5 // pred_fallthru
      _
    %p236 = scmp.le.s32.totalorder 1, %s13
    %p237 = scmp.lt.s32.totalorder %s13, 3
    %p238 = pnand %p236, %p237
    %p239 = pneg %p238
    // Predicated region
    $region45: #{res_grad_attention.1} parent=5 // pred_check
      _
    $region46: #{res_grad_attention.1} parent=5 // pred_check_branch
      %241 = sbr.rel (%p238) target = $region48
    $region47: #{res_grad_attention.1} parent=5 // pred_region
      %s242 = ssub.s32 %s13, 1
      %p243 = scmp.lt.s32.totalorder %s18, 1
      %s244 = scalar_select %p243, %s18, 1
      %s245 = smul.addr %s244, 12
      %s246 = smul.addr %s245, 8
      %s247 = scalar_lea.vmem %s0, %s246
      %p248 = pneg %p39
      %p249 = pneg %p36
      %p250 = pneg %p60
      %p251 = pneg %p57
      %p252 = pneg %p81
      %p253 = pneg %p78
      %p254 = pneg %p102
      %p255 = pneg %p99
      %p256 = pneg %p123
      %p257 = pneg %p120
      %p258 = pneg %p144
      %p259 = pneg %p141
      %p260 = pneg %p165
      %p261 = pneg %p162
      %p262 = pneg %p191
      %p263 = pneg %p188
      %p264 = scmp.lt.s32.totalorder %s18, 1
      %s265 = scalar_select %p264, %s18, 1
      %s266 = smul.addr %s265, 8
      %s267 = smul.addr %s266, 8
      %s268 = scalar_lea.vmem %s7, %s267
      %p269 = scmp.lt.s32.totalorder %s18, 1
      %s270 = scalar_select %p269, %s18, 1
      %s271 = smul.addr %s270, 12
      %s272 = smul.addr %s271, 8
      %s273 = scalar_lea.vmem %s0, %s272
      %p274 = scmp.lt.s32.totalorder %s18, 1
      %s275 = scalar_select %p274, %s18, 1
      %s276 = smul.addr %s275, 8
      %s277 = smul.addr %s276, 8
      %s278 = scalar_lea.vmem %s7, %s277
      %v279 = vld [vmem:[%s1] sm:$0xff]
      %v280 = vld [vmem:[%s1 + $0x8] sm:$0xff]
      %v281 = vld [vmem:[%s1 + $0x10] sm:$0xff]
      %v282 = vld [vmem:[%s1 + $0x18] sm:$0xff]
      %v283 = vld [vmem:[%s2] sm:$0x1]
      %v284 = vld [vmem:[%s3] sm:$0xff]
      %v285 = vld [vmem:[%s3 + $0x8] sm:$0xff]
      %v286 = vld [vmem:[%s3 + $0x10] sm:$0xff]
      %v287 = vld [vmem:[%s3 + $0x18] sm:$0xff]
      %v288 = vld [vmem:[%s4] sm:$0xff]
      %v289 = vld [vmem:[%s4 + $0x8] sm:$0xff]
      %v290 = vld [vmem:[%s4 + $0x10] sm:$0xff]
      %v291 = vld [vmem:[%s4 + $0x18] sm:$0xff]
      %v292 = vld [vmem:[%s273] sm:$0xff]
      %v293 = vld [vmem:[%s273 + $0x8] sm:$0xff]
      %v294 = vld [vmem:[%s273 + $0x10] sm:$0xff]
      %v295 = vld [vmem:[%s273 + $0x18] sm:$0xff]
      %v296 = vld [vmem:[%s273 + $0x20] sm:$0xff]
      %v297 = vld [vmem:[%s273 + $0x28] sm:$0xff]
      %v298 = vld [vmem:[%s273 + $0x30] sm:$0xff]
      %v299 = vld [vmem:[%s273 + $0x38] sm:$0xff]
      %v300 = vld [vmem:[%s273 + $0x40] sm:$0xff]
      %v301 = vld [vmem:[%s273 + $0x48] sm:$0xff]
      %v302 = vld [vmem:[%s273 + $0x50] sm:$0xff]
      %v303 = vld [vmem:[%s273 + $0x58] sm:$0xff]
      %316 = vrot.lane.b32.xlu0 %v292, 111
      %v317 = vpop.permute.xlu0 %316
      %318 = vrot.lane.b32.xlu0 %v293, 111
      %v319 = vpop.permute.xlu0 %318
      %320 = vrot.lane.b32.xlu0 %v294, 111
      %v321 = vpop.permute.xlu0 %320
      %322 = vrot.lane.b32.xlu0 %v295, 111
      %v323 = vpop.permute.xlu0 %322
      %324 = vrot.lane.b32.xlu0 %v296, 111
      %v325 = vpop.permute.xlu0 %324
      %326 = vrot.lane.b32.xlu0 %v297, 111
      %v327 = vpop.permute.xlu0 %326
      %328 = vrot.lane.b32.xlu0 %v298, 111
      %v329 = vpop.permute.xlu0 %328
      %330 = vrot.lane.b32.xlu0 %v299, 111
      %v331 = vpop.permute.xlu0 %330
      %332 = vrot.lane.b32.xlu0 %v300, 111
      %v333 = vpop.permute.xlu0 %332
      %334 = vrot.lane.b32.xlu0 %v301, 111
      %v335 = vpop.permute.xlu0 %334
      %336 = vrot.lane.b32.xlu0 %v302, 111
      %v337 = vpop.permute.xlu0 %336
      %338 = vrot.lane.b32.xlu0 %v303, 111
      %v339 = vpop.permute.xlu0 %338
      %vm340 = vcmask 908288
      %v341 = vsel %vm340, %v317, %v319
      %v342 = vsel %vm340, %v319, %v321
      %v343 = vsel %vm340, %v323, %v325
      %v344 = vsel %vm340, %v325, %v327
      %v345 = vsel %vm340, %v329, %v331
      %v346 = vsel %vm340, %v331, %v333
      %v347 = vsel %vm340, %v335, %v337
      %v348 = vsel %vm340, %v337, %v339
      %v357 = vadd.f32 %v341, %v342
      %358 = vadd.xlane.f32.xlu0 %v357
      %v359 = vpop.xlane.xlu0 %358
      %v360 = vadd.f32 %v343, %v344
      %361 = vadd.xlane.f32.xlu0 %v360
      %v362 = vpop.xlane.xlu0 %361
      %v363 = vadd.f32 %v345, %v346
      %364 = vadd.xlane.f32.xlu0 %v363
      %v365 = vpop.xlane.xlu0 %364
      %v366 = vadd.f32 %v347, %v348
      %367 = vadd.xlane.f32.xlu0 %v366
      %v368 = vpop.xlane.xlu0 %367
      %v369 = vrcp.pop 256.0
      %v370 = vmul.f32 256.0, %v369
      %v371 = vsub.f32 1.0, %v370
      %v372 = vmul.f32 %v369, %v371
      %v373 = vadd.f32 %v369, %v372
      %vm374 = vweird.f32 %v369
      %v375 = vsel %vm374, %v369, %v373
      %v376 = vmul.f32 %v359, %v375
      %v377 = vmul.f32 %v362, %v375
      %v378 = vmul.f32 %v365, %v375
      %v379 = vmul.f32 %v368, %v375
      %v380 = vmul.f32 %v279, %v376
      %v381 = vmul.f32 %v280, %v377
      %v382 = vmul.f32 %v281, %v378
      %v383 = vmul.f32 %v282, %v379
      %vm384 = vcmask 15360
      %v385 = vsel %vm384, %v380, 0.0
      %v386 = vsel %vm384, %v381, 0.0
      %v387 = vadd.f32 %v385, %v386
      %v388 = vsel %vm384, %v382, 0.0
      %v389 = vadd.f32 %v387, %v388
      %v390 = vsel %vm384, %v383, 0.0
      %v391 = vadd.f32 %v389, %v390
      %v392 = vrot.slane %v391, 4
      %v393 = vadd.f32 %v391, %v392
      %v394 = vrot.slane %v393, 2
      %v395 = vadd.f32 %v393, %v394
      %v396 = vrot.slane %v395, 1
      %v397 = vadd.f32 %v395, %v396
      %v398 = vadd.f32 %v397, %v283
      %v399 = vmax.f32 %v398, 0.0
      %v400 = vperm.slane %v399, 0
      %v401 = vmul.f32 %v284, %v400
      %v402 = vmul.f32 %v285, %v400
      %v403 = vmul.f32 %v286, %v400
      %v404 = vmul.f32 %v287, %v400
      %v405 = vsel %vm384, %v401, 0.0
      %406 = vadd.xlane.f32.xlu0 %v405
      %v407 = vpop.xlane.xlu0 %406
      %v408 = vsel %vm384, %v402, 0.0
      %409 = vadd.xlane.f32.xlu0 %v408
      %v410 = vpop.xlane.xlu0 %409
      %v411 = vsel %vm384, %v403, 0.0
      %412 = vadd.xlane.f32.xlu0 %v411
      %v413 = vpop.xlane.xlu0 %412
      %v414 = vsel %vm384, %v404, 0.0
      %415 = vadd.xlane.f32.xlu0 %v414
      %v416 = vpop.xlane.xlu0 %415
      %v417 = vadd.f32 %v407, %v288
      %v418 = vadd.f32 %v410, %v289
      %v419 = vadd.f32 %v413, %v290
      %v420 = vadd.f32 %v416, %v291
      %v421 = vxor.u32 %v417, 2147483648
      %v422 = vxor.u32 %v418, 2147483648
      %v423 = vxor.u32 %v419, 2147483648
      %v424 = vxor.u32 %v420, 2147483648
      %v425 = vmul.f32 %v421, 1.442695
      %v426 = vpow.pop %v425
      %v427 = vmul.f32 %v422, 1.442695
      %v428 = vpow.pop %v427
      %v429 = vmul.f32 %v423, 1.442695
      %v430 = vpow.pop %v429
      %v431 = vmul.f32 %v424, 1.442695
      %v432 = vpow.pop %v431
      %v433 = vadd.f32 %v426, 1.0
      %v434 = vadd.f32 %v428, 1.0
      %v435 = vadd.f32 %v430, 1.0
      %v436 = vadd.f32 %v432, 1.0
      %v437 = vrcp.pop %v433
      %v438 = vmul.f32 %v433, %v437
      %v439 = vsub.f32 1.0, %v438
      %v440 = vmul.f32 %v437, %v439
      %v441 = vadd.f32 %v437, %v440
      %vm442 = vweird.f32 %v433
      %vm443 = vweird.f32 %v437
      %vm444 = vmor %vm442, %vm443
      %v445 = vsel %vm444, %v437, %v441
      %v446 = vand.u32 2147483647, %v433
      %vm447 = vcmp.eq.f32.partialorder %v446, 8.507059e+37
      %v448 = vand.u32 %v433, 2147483648
      %v449 = vor.u32 1.1754944e-38, %v448
      %v450 = vsel %vm447, %v449, %v445
      %v451 = vmul.f32 1.0, %v450
      %v452 = vrcp.pop %v434
      %v453 = vmul.f32 %v434, %v452
      %v454 = vsub.f32 1.0, %v453
      %v455 = vmul.f32 %v452, %v454
      %v456 = vadd.f32 %v452, %v455
      %vm457 = vweird.f32 %v434
      %vm458 = vweird.f32 %v452
      %vm459 = vmor %vm457, %vm458
      %v460 = vsel %vm459, %v452, %v456
      %v461 = vand.u32 2147483647, %v434
      %vm462 = vcmp.eq.f32.partialorder %v461, 8.507059e+37
      %v463 = vand.u32 %v434, 2147483648
      %v464 = vor.u32 1.1754944e-38, %v463
      %v465 = vsel %vm462, %v464, %v460
      %v466 = vmul.f32 1.0, %v465
      %v467 = vrcp.pop %v435
      %v468 = vmul.f32 %v435, %v467
      %v469 = vsub.f32 1.0, %v468
      %v470 = vmul.f32 %v467, %v469
      %v471 = vadd.f32 %v467, %v470
      %vm472 = vweird.f32 %v435
      %vm473 = vweird.f32 %v467
      %vm474 = vmor %vm472, %vm473
      %v475 = vsel %vm474, %v467, %v471
      %v476 = vand.u32 2147483647, %v435
      %vm477 = vcmp.eq.f32.partialorder %v476, 8.507059e+37
      %v478 = vand.u32 %v435, 2147483648
      %v479 = vor.u32 1.1754944e-38, %v478
      %v480 = vsel %vm477, %v479, %v475
      %v481 = vmul.f32 1.0, %v480
      %v482 = vrcp.pop %v436
      %v483 = vmul.f32 %v436, %v482
      %v484 = vsub.f32 1.0, %v483
      %v485 = vmul.f32 %v482, %v484
      %v486 = vadd.f32 %v482, %v485
      %vm487 = vweird.f32 %v436
      %vm488 = vweird.f32 %v482
      %vm489 = vmor %vm487, %vm488
      %v490 = vsel %vm489, %v482, %v486
      %v491 = vand.u32 2147483647, %v436
      %vm492 = vcmp.eq.f32.partialorder %v491, 8.507059e+37
      %v493 = vand.u32 %v436, 2147483648
      %v494 = vor.u32 1.1754944e-38, %v493
      %v495 = vsel %vm492, %v494, %v490
      %v496 = vmul.f32 1.0, %v495
      %498 = vset.pattern.permute.xlu0 0
      %499 = vperm.xlu0 %498, %v451
      %v500 = vpop.permute.xlu0 %499
      %503 = vset.pattern.permute.xlu0 0
      %504 = vperm.xlu0 %503, %v466
      %v505 = vpop.permute.xlu0 %504
      %508 = vset.pattern.permute.xlu0 0
      %509 = vperm.xlu0 %508, %v481
      %v510 = vpop.permute.xlu0 %509
      %513 = vset.pattern.permute.xlu0 0
      %514 = vperm.xlu0 %513, %v496
      %v515 = vpop.permute.xlu0 %514
      %v517 = vmul.f32 %v292, %v500
      %v518 = vmul.f32 %v293, %v500
      %v519 = vmul.f32 %v294, %v500
      %v520 = vmul.f32 %v295, %v505
      %v521 = vmul.f32 %v296, %v505
      %v522 = vmul.f32 %v297, %v505
      %v523 = vmul.f32 %v298, %v510
      %v524 = vmul.f32 %v299, %v510
      %v525 = vmul.f32 %v300, %v510
      %v526 = vmul.f32 %v301, %v515
      %v527 = vmul.f32 %v302, %v515
      %v528 = vmul.f32 %v303, %v515
      %v529 = vlaneseq
      %v530 = vand.u32 %v529, 127
      %v531 = vadd.s32 %v530, 128
      %vm532 = vcmp.lt.s32.totalorder %v530, 0
      %v533 = vsub.s32 0, %v530
      %v534 = vsel %vm532, %v533, %v530
      %v535 = vshrl.u32 %v534, 4
      %v536 = vand.u32 %v534, 15
      %v537 = vsub.s32 0, %v536
      %v538 = vsel %vm532, %v537, %v536
      %vm539 = vcmp.lt.s32.totalorder %v531, 0
      %v540 = vsub.s32 0, %v531
      %v541 = vsel %vm539, %v540, %v531
      %v542 = vshrl.u32 %v541, 4
      %v543 = vand.u32 %v541, 15
      %v544 = vsub.s32 0, %v543
      %v545 = vsel %vm539, %v544, %v543
      %vm546 = vcmp.ne.s32.totalorder %v538, 0
      %vm547 = vcmp.ne.s32.totalorder %v545, 0
      %vm548 = vcmp.lt.s32.totalorder %v538, 0
      %vm549 = vcmp.lt.s32.totalorder %v545, 0
      %vm550 = vmand %vm548, %vm546
      %vm551 = vmand %vm549, %vm547
      %v552 = vadd.s32 %v538, 16
      %v553 = vadd.s32 %v545, 16
      %v554 = vsel %vm550, %v552, %v538
      %v555 = vsel %vm551, %v553, %v545
      %vm556 = vcmp.ge.s32.totalorder %v554, 1
      %vm557 = vcmp.ge.s32.totalorder %v555, 1
      %vm558 = vcmp.le.s32.totalorder %v554, 14
      %vm559 = vcmp.le.s32.totalorder %v555, 14
      %v560 = vld [vmem:[%s273] sm:$0xff]
      %v561 = vld [vmem:[%s273 + $0x8] sm:$0xff]
      %v562 = vld [vmem:[%s273 + $0x18] sm:$0xff]
      %v563 = vld [vmem:[%s273 + $0x20] sm:$0xff]
      %v564 = vld [vmem:[%s273 + $0x30] sm:$0xff]
      %v565 = vld [vmem:[%s273 + $0x38] sm:$0xff]
      %v566 = vld [vmem:[%s273 + $0x48] sm:$0xff]
      %v567 = vld [vmem:[%s273 + $0x50] sm:$0xff]
      %v568 = vsel %vm556, 1, 0
      %v569 = vsel %vm557, 1, 0
      %vm570 = vcmp.eq.s32.totalorder %v568, 1
      %vm571 = vcmp.eq.s32.totalorder %v569, 1
      %v572 = vsel %vm570, %v560, 0.0
      %v573 = vsel %vm571, %v561, 0.0
      %v574 = vsel %vm570, %v562, 0.0
      %v575 = vsel %vm571, %v563, 0.0
      %v576 = vsel %vm570, %v564, 0.0
      %v577 = vsel %vm571, %v565, 0.0
      %v578 = vsel %vm570, %v566, 0.0
      %v579 = vsel %vm571, %v567, 0.0
      %v580 = vsel %vm558, 1, 0
      %v581 = vsel %vm559, 1, 0
      %vm582 = vcmp.eq.s32.totalorder %v580, 1
      %vm583 = vcmp.eq.s32.totalorder %v581, 1
      %584 = vrot.lane.b32.xlu0 %v292, 126
      %v585 = vpop.permute.xlu0 %584
      %586 = vrot.lane.b32.xlu0 %v293, 126
      %v587 = vpop.permute.xlu0 %586
      %588 = vrot.lane.b32.xlu0 %v294, 126
      %v589 = vpop.permute.xlu0 %588
      %590 = vrot.lane.b32.xlu0 %v295, 126
      %v591 = vpop.permute.xlu0 %590
      %592 = vrot.lane.b32.xlu0 %v296, 126
      %v593 = vpop.permute.xlu0 %592
      %594 = vrot.lane.b32.xlu0 %v297, 126
      %v595 = vpop.permute.xlu0 %594
      %596 = vrot.lane.b32.xlu0 %v298, 126
      %v597 = vpop.permute.xlu0 %596
      %598 = vrot.lane.b32.xlu0 %v299, 126
      %v599 = vpop.permute.xlu0 %598
      %600 = vrot.lane.b32.xlu0 %v300, 126
      %v601 = vpop.permute.xlu0 %600
      %602 = vrot.lane.b32.xlu0 %v301, 126
      %v603 = vpop.permute.xlu0 %602
      %604 = vrot.lane.b32.xlu0 %v302, 126
      %v605 = vpop.permute.xlu0 %604
      %606 = vrot.lane.b32.xlu0 %v303, 126
      %v607 = vpop.permute.xlu0 %606
      %vm608 = vcmask 1031168
      %v609 = vsel %vm608, %v585, %v587
      %v610 = vsel %vm608, %v587, %v589
      %v611 = vsel %vm608, %v591, %v593
      %v612 = vsel %vm608, %v593, %v595
      %v613 = vsel %vm608, %v597, %v599
      %v614 = vsel %vm608, %v599, %v601
      %v615 = vsel %vm608, %v603, %v605
      %v616 = vsel %vm608, %v605, %v607
      %v625 = vsel %vm582, %v609, 0.0
      %v626 = vsel %vm583, %v610, 0.0
      %v627 = vsel %vm582, %v611, 0.0
      %v628 = vsel %vm583, %v612, 0.0
      %v629 = vsel %vm582, %v613, 0.0
      %v630 = vsel %vm583, %v614, 0.0
      %v631 = vsel %vm582, %v615, 0.0
      %v632 = vsel %vm583, %v616, 0.0
      %633 = vrot.lane.b32.xlu0 %v292, 112
      %v634 = vpop.permute.xlu0 %633
      %635 = vrot.lane.b32.xlu0 %v293, 112
      %v636 = vpop.permute.xlu0 %635
      %637 = vrot.lane.b32.xlu0 %v294, 112
      %v638 = vpop.permute.xlu0 %637
      %639 = vrot.lane.b32.xlu0 %v295, 112
      %v640 = vpop.permute.xlu0 %639
      %641 = vrot.lane.b32.xlu0 %v296, 112
      %v642 = vpop.permute.xlu0 %641
      %643 = vrot.lane.b32.xlu0 %v297, 112
      %v644 = vpop.permute.xlu0 %643
      %645 = vrot.lane.b32.xlu0 %v298, 112
      %v646 = vpop.permute.xlu0 %645
      %647 = vrot.lane.b32.xlu0 %v299, 112
      %v648 = vpop.permute.xlu0 %647
      %649 = vrot.lane.b32.xlu0 %v300, 112
      %v650 = vpop.permute.xlu0 %649
      %651 = vrot.lane.b32.xlu0 %v301, 112
      %v652 = vpop.permute.xlu0 %651
      %653 = vrot.lane.b32.xlu0 %v302, 112
      %v654 = vpop.permute.xlu0 %653
      %655 = vrot.lane.b32.xlu0 %v303, 112
      %v656 = vpop.permute.xlu0 %655
      %vm657 = vcmask 916480
      %v658 = vsel %vm657, %v634, %v636
      %v659 = vsel %vm657, %v636, %v638
      %v660 = vsel %vm657, %v640, %v642
      %v661 = vsel %vm657, %v642, %v644
      %v662 = vsel %vm657, %v646, %v648
      %v663 = vsel %vm657, %v648, %v650
      %v664 = vsel %vm657, %v652, %v654
      %v665 = vsel %vm657, %v654, %v656
      %v674 = vsel %vm570, %v658, 0.0
      %v675 = vsel %vm571, %v659, 0.0
      %v676 = vsel %vm570, %v660, 0.0
      %v677 = vsel %vm571, %v661, 0.0
      %v678 = vsel %vm570, %v662, 0.0
      %v679 = vsel %vm571, %v663, 0.0
      %v680 = vsel %vm570, %v664, 0.0
      %v681 = vsel %vm571, %v665, 0.0
      %682 = vrot.lane.b32.xlu0 %v292, 110
      %v683 = vpop.permute.xlu0 %682
      %684 = vrot.lane.b32.xlu0 %v293, 110
      %v685 = vpop.permute.xlu0 %684
      %686 = vrot.lane.b32.xlu0 %v294, 110
      %v687 = vpop.permute.xlu0 %686
      %688 = vrot.lane.b32.xlu0 %v295, 110
      %v689 = vpop.permute.xlu0 %688
      %690 = vrot.lane.b32.xlu0 %v296, 110
      %v691 = vpop.permute.xlu0 %690
      %692 = vrot.lane.b32.xlu0 %v297, 110
      %v693 = vpop.permute.xlu0 %692
      %694 = vrot.lane.b32.xlu0 %v298, 110
      %v695 = vpop.permute.xlu0 %694
      %696 = vrot.lane.b32.xlu0 %v299, 110
      %v697 = vpop.permute.xlu0 %696
      %698 = vrot.lane.b32.xlu0 %v300, 110
      %v699 = vpop.permute.xlu0 %698
      %700 = vrot.lane.b32.xlu0 %v301, 110
      %v701 = vpop.permute.xlu0 %700
      %702 = vrot.lane.b32.xlu0 %v302, 110
      %v703 = vpop.permute.xlu0 %702
      %704 = vrot.lane.b32.xlu0 %v303, 110
      %v705 = vpop.permute.xlu0 %704
      %vm706 = vcmask 900096
      %v707 = vsel %vm706, %v683, %v685
      %v708 = vsel %vm706, %v685, %v687
      %v709 = vsel %vm706, %v689, %v691
      %v710 = vsel %vm706, %v691, %v693
      %v711 = vsel %vm706, %v695, %v697
      %v712 = vsel %vm706, %v697, %v699
      %v713 = vsel %vm706, %v701, %v703
      %v714 = vsel %vm706, %v703, %v705
      %v723 = vsel %vm582, %v707, 0.0
      %v724 = vsel %vm583, %v708, 0.0
      %v725 = vsel %vm582, %v709, 0.0
      %v726 = vsel %vm583, %v710, 0.0
      %v727 = vsel %vm582, %v711, 0.0
      %v728 = vsel %vm583, %v712, 0.0
      %v729 = vsel %vm582, %v713, 0.0
      %v730 = vsel %vm583, %v714, 0.0
      %731 = vrot.lane.b32.xlu0 %v292, 96
      %v732 = vpop.permute.xlu0 %731
      %733 = vrot.lane.b32.xlu0 %v293, 96
      %v734 = vpop.permute.xlu0 %733
      %735 = vrot.lane.b32.xlu0 %v294, 96
      %v736 = vpop.permute.xlu0 %735
      %737 = vrot.lane.b32.xlu0 %v295, 96
      %v738 = vpop.permute.xlu0 %737
      %739 = vrot.lane.b32.xlu0 %v296, 96
      %v740 = vpop.permute.xlu0 %739
      %741 = vrot.lane.b32.xlu0 %v297, 96
      %v742 = vpop.permute.xlu0 %741
      %743 = vrot.lane.b32.xlu0 %v298, 96
      %v744 = vpop.permute.xlu0 %743
      %745 = vrot.lane.b32.xlu0 %v299, 96
      %v746 = vpop.permute.xlu0 %745
      %747 = vrot.lane.b32.xlu0 %v300, 96
      %v748 = vpop.permute.xlu0 %747
      %749 = vrot.lane.b32.xlu0 %v301, 96
      %v750 = vpop.permute.xlu0 %749
      %751 = vrot.lane.b32.xlu0 %v302, 96
      %v752 = vpop.permute.xlu0 %751
      %753 = vrot.lane.b32.xlu0 %v303, 96
      %v754 = vpop.permute.xlu0 %753
      %vm755 = vcmask 785408
      %v756 = vsel %vm755, %v732, %v734
      %v757 = vsel %vm755, %v734, %v736
      %v758 = vsel %vm755, %v738, %v740
      %v759 = vsel %vm755, %v740, %v742
      %v760 = vsel %vm755, %v744, %v746
      %v761 = vsel %vm755, %v746, %v748
      %v762 = vsel %vm755, %v750, %v752
      %v763 = vsel %vm755, %v752, %v754
      %v772 = vsel %vm570, %v756, 0.0
      %v773 = vsel %vm571, %v757, 0.0
      %v774 = vsel %vm570, %v758, 0.0
      %v775 = vsel %vm571, %v759, 0.0
      %v776 = vsel %vm570, %v760, 0.0
      %v777 = vsel %vm571, %v761, 0.0
      %v778 = vsel %vm570, %v762, 0.0
      %v779 = vsel %vm571, %v763, 0.0
      %780 = vrot.lane.b32.xlu0 %v292, 94
      %v781 = vpop.permute.xlu0 %780
      %782 = vrot.lane.b32.xlu0 %v293, 94
      %v783 = vpop.permute.xlu0 %782
      %784 = vrot.lane.b32.xlu0 %v294, 94
      %v785 = vpop.permute.xlu0 %784
      %786 = vrot.lane.b32.xlu0 %v295, 94
      %v787 = vpop.permute.xlu0 %786
      %788 = vrot.lane.b32.xlu0 %v296, 94
      %v789 = vpop.permute.xlu0 %788
      %790 = vrot.lane.b32.xlu0 %v297, 94
      %v791 = vpop.permute.xlu0 %790
      %792 = vrot.lane.b32.xlu0 %v298, 94
      %v793 = vpop.permute.xlu0 %792
      %794 = vrot.lane.b32.xlu0 %v299, 94
      %v795 = vpop.permute.xlu0 %794
      %796 = vrot.lane.b32.xlu0 %v300, 94
      %v797 = vpop.permute.xlu0 %796
      %798 = vrot.lane.b32.xlu0 %v301, 94
      %v799 = vpop.permute.xlu0 %798
      %800 = vrot.lane.b32.xlu0 %v302, 94
      %v801 = vpop.permute.xlu0 %800
      %802 = vrot.lane.b32.xlu0 %v303, 94
      %v803 = vpop.permute.xlu0 %802
      %vm804 = vcmask 769024
      %v805 = vsel %vm804, %v781, %v783
      %v806 = vsel %vm804, %v783, %v785
      %v807 = vsel %vm804, %v787, %v789
      %v808 = vsel %vm804, %v789, %v791
      %v809 = vsel %vm804, %v793, %v795
      %v810 = vsel %vm804, %v795, %v797
      %v811 = vsel %vm804, %v799, %v801
      %v812 = vsel %vm804, %v801, %v803
      %v821 = vsel %vm582, %v805, 0.0
      %v822 = vsel %vm583, %v806, 0.0
      %v823 = vsel %vm582, %v807, 0.0
      %v824 = vsel %vm583, %v808, 0.0
      %v825 = vsel %vm582, %v809, 0.0
      %v826 = vsel %vm583, %v810, 0.0
      %v827 = vsel %vm582, %v811, 0.0
      %v828 = vsel %vm583, %v812, 0.0
      %829 = vrot.lane.b32.xlu0 %v292, 127
      %v830 = vpop.permute.xlu0 %829
      %831 = vrot.lane.b32.xlu0 %v293, 127
      %v832 = vpop.permute.xlu0 %831
      %833 = vrot.lane.b32.xlu0 %v294, 127
      %v834 = vpop.permute.xlu0 %833
      %835 = vrot.lane.b32.xlu0 %v295, 127
      %v836 = vpop.permute.xlu0 %835
      %837 = vrot.lane.b32.xlu0 %v296, 127
      %v838 = vpop.permute.xlu0 %837
      %839 = vrot.lane.b32.xlu0 %v297, 127
      %v840 = vpop.permute.xlu0 %839
      %841 = vrot.lane.b32.xlu0 %v298, 127
      %v842 = vpop.permute.xlu0 %841
      %843 = vrot.lane.b32.xlu0 %v299, 127
      %v844 = vpop.permute.xlu0 %843
      %845 = vrot.lane.b32.xlu0 %v300, 127
      %v846 = vpop.permute.xlu0 %845
      %847 = vrot.lane.b32.xlu0 %v301, 127
      %v848 = vpop.permute.xlu0 %847
      %849 = vrot.lane.b32.xlu0 %v302, 127
      %v850 = vpop.permute.xlu0 %849
      %851 = vrot.lane.b32.xlu0 %v303, 127
      %v852 = vpop.permute.xlu0 %851
      %vm853 = vcmask 1039360
      %v854 = vsel %vm853, %v830, %v832
      %v855 = vsel %vm853, %v832, %v834
      %v856 = vsel %vm853, %v836, %v838
      %v857 = vsel %vm853, %v838, %v840
      %v858 = vsel %vm853, %v842, %v844
      %v859 = vsel %vm853, %v844, %v846
      %v860 = vsel %vm853, %v848, %v850
      %v861 = vsel %vm853, %v850, %v852
      %870 = vrot.lane.b32.xlu0 %v292, 95
      %v871 = vpop.permute.xlu0 %870
      %872 = vrot.lane.b32.xlu0 %v293, 95
      %v873 = vpop.permute.xlu0 %872
      %874 = vrot.lane.b32.xlu0 %v294, 95
      %v875 = vpop.permute.xlu0 %874
      %876 = vrot.lane.b32.xlu0 %v295, 95
      %v877 = vpop.permute.xlu0 %876
      %878 = vrot.lane.b32.xlu0 %v296, 95
      %v879 = vpop.permute.xlu0 %878
      %880 = vrot.lane.b32.xlu0 %v297, 95
      %v881 = vpop.permute.xlu0 %880
      %882 = vrot.lane.b32.xlu0 %v298, 95
      %v883 = vpop.permute.xlu0 %882
      %884 = vrot.lane.b32.xlu0 %v299, 95
      %v885 = vpop.permute.xlu0 %884
      %886 = vrot.lane.b32.xlu0 %v300, 95
      %v887 = vpop.permute.xlu0 %886
      %888 = vrot.lane.b32.xlu0 %v301, 95
      %v889 = vpop.permute.xlu0 %888
      %890 = vrot.lane.b32.xlu0 %v302, 95
      %v891 = vpop.permute.xlu0 %890
      %892 = vrot.lane.b32.xlu0 %v303, 95
      %v893 = vpop.permute.xlu0 %892
      %vm894 = vcmask 777216
      %v895 = vsel %vm894, %v871, %v873
      %v896 = vsel %vm894, %v873, %v875
      %v897 = vsel %vm894, %v877, %v879
      %v898 = vsel %vm894, %v879, %v881
      %v899 = vsel %vm894, %v883, %v885
      %v900 = vsel %vm894, %v885, %v887
      %v901 = vsel %vm894, %v889, %v891
      %v902 = vsel %vm894, %v891, %v893
      %v911 = vld [vmem:[%s5] sm:$0xff]
      %v912 = vld [vmem:[%s5 + $0x8] sm:$0xff]
      %v913 = vld [vmem:[%s5 + $0x10] sm:$0xff]
      %v914 = vld [vmem:[%s5 + $0x18] sm:$0xff]
      %v915 = vld [vmem:[%s5 + $0x20] sm:$0xff]
      %v916 = vld [vmem:[%s5 + $0x28] sm:$0xff]
      %v917 = vld [vmem:[%s5 + $0x30] sm:$0xff]
      %v918 = vld [vmem:[%s5 + $0x38] sm:$0xff]
      %v919 = vld [vmem:[%s5 + $0x40] sm:$0xff]
      %v920 = vld [vmem:[%s5 + $0x48] sm:$0xff]
      %v921 = vld [vmem:[%s5 + $0x50] sm:$0xff]
      %v922 = vld [vmem:[%s5 + $0x58] sm:$0xff]
      %v923 = vld [vmem:[%s5 + $0x60] sm:$0xff]
      %v924 = vld [vmem:[%s5 + $0x68] sm:$0xff]
      %v925 = vld [vmem:[%s5 + $0x70] sm:$0xff]
      %v926 = vld [vmem:[%s5 + $0x78] sm:$0xff]
      %v927 = vld [vmem:[%s5 + $0x80] sm:$0xff]
      %v928 = vld [vmem:[%s5 + $0x88] sm:$0xff]
      %v929 = vld [vmem:[%s5 + $0x90] sm:$0xff]
      %v930 = vld [vmem:[%s5 + $0x98] sm:$0xff]
      %v931 = vld [vmem:[%s5 + $0xa0] sm:$0xff]
      %v932 = vld [vmem:[%s5 + $0xa8] sm:$0xff]
      %v933 = vld [vmem:[%s5 + $0xb0] sm:$0xff]
      %v934 = vld [vmem:[%s5 + $0xb8] sm:$0xff]
      %v935 = vld [vmem:[%s6] sm:$0xff]
      %v936 = vld [vmem:[%s6 + $0x8] sm:$0xff]
      %v937 = vld [vmem:[%s6 + $0x10] sm:$0xff]
      %v938 = vld [vmem:[%s6 + $0x18] sm:$0xff]
      %v939 = vld [vmem:[%s6 + $0x20] sm:$0xff]
      %v940 = vld [vmem:[%s6 + $0x28] sm:$0xff]
      %v941 = vld [vmem:[%s6 + $0x30] sm:$0xff]
      %v942 = vld [vmem:[%s6 + $0x38] sm:$0xff]
      %944 = vset.pattern.permute.xlu0 0
      %945 = vperm.xlu0 %944, %v935
      %v946 = vpop.permute.xlu0 %945
      %949 = vset.pattern.permute.xlu0 0
      %950 = vperm.xlu0 %949, %v936
      %v951 = vpop.permute.xlu0 %950
      %954 = vset.pattern.permute.xlu0 0
      %955 = vperm.xlu0 %954, %v937
      %v956 = vpop.permute.xlu0 %955
      %959 = vset.pattern.permute.xlu0 0
      %960 = vperm.xlu0 %959, %v938
      %v961 = vpop.permute.xlu0 %960
      %964 = vset.pattern.permute.xlu0 0
      %965 = vperm.xlu0 %964, %v939
      %v966 = vpop.permute.xlu0 %965
      %969 = vset.pattern.permute.xlu0 0
      %970 = vperm.xlu0 %969, %v940
      %v971 = vpop.permute.xlu0 %970
      %974 = vset.pattern.permute.xlu0 0
      %975 = vperm.xlu0 %974, %v941
      %v976 = vpop.permute.xlu0 %975
      %979 = vset.pattern.permute.xlu0 0
      %980 = vperm.xlu0 %979, %v942
      %v981 = vpop.permute.xlu0 %980
      %vm983 = vcmask 261120
      %v985 = vsel %vm983, %v913, 0
      %v988 = vsel %vm983, %v916, 0
      %v991 = vsel %vm983, %v919, 0
      %v994 = vsel %vm983, %v922, 0
      %v997 = vsel %vm983, %v925, 0
      %v1000 = vsel %vm983, %v928, 0
      %v1003 = vsel %vm983, %v931, 0
      %v1006 = vsel %vm983, %v934, 0
      %1008 = vmatpush.msra.mxu0 %v680
      %1009 = vmatpush.msra.mxu0 %v678
      %1010 = vmatpush.msra.mxu0 %v676
      %1011 = vmatpush.msra.mxu0 %v674
      %1012 = vmatpush.msra.mxu0 %v631
      %1013 = vmatpush.msra.mxu0 %v629
      %1014 = vmatpush.msra.mxu0 %v627
      %1015 = vmatpush.msra.mxu0 %v625
      %1016 = vmatpush.msra.mxu0 %v860
      %1017 = vmatpush.msra.mxu0 %v858
      %1018 = vmatpush.msra.mxu0 %v856
      %1019 = vmatpush.msra.mxu0 %v854
      %1020 = vmatpush.msra.mxu0 %v578
      %1021 = vmatpush.msra.mxu0 %v576
      %1022 = vmatpush.msra.mxu0 %v574
      %1023 = vmatpush.msra.mxu0 %v572
      %1024 = vmatmul.f32.gmra.mxu0 %v911
      %v1025 = vpop.f32.mrf.mxu0
      %v1026 = vadd.f32 %v946, %v1025
      %1027 = vmatmul.f32.gmra.mxu0 %v914
      %v1028 = vpop.f32.mrf.mxu0
      %v1029 = vadd.f32 %v951, %v1028
      %1030 = vmatmul.f32.gmra.mxu0 %v917
      %v1031 = vpop.f32.mrf.mxu0
      %v1032 = vadd.f32 %v956, %v1031
      %1033 = vmatmul.f32.gmra.mxu0 %v920
      %v1034 = vpop.f32.mrf.mxu0
      %v1035 = vadd.f32 %v961, %v1034
      %1036 = vmatmul.f32.gmra.mxu0 %v923
      %v1037 = vpop.f32.mrf.mxu0
      %v1038 = vadd.f32 %v966, %v1037
      %1039 = vmatmul.f32.gmra.mxu0 %v926
      %v1040 = vpop.f32.mrf.mxu0
      %v1041 = vadd.f32 %v971, %v1040
      %1042 = vmatmul.f32.gmra.mxu0 %v929
      %v1043 = vpop.f32.mrf.mxu0
      %v1044 = vadd.f32 %v976, %v1043
      %1045 = vmatmul.f32.gmra.mxu0 %v932
      %v1046 = vpop.f32.mrf.mxu0
      %v1047 = vadd.f32 %v981, %v1046
      %1048 = vdwg.mxu0
      %1049 = vmatpush.msra.mxu0 %v901
      %1050 = vmatpush.msra.mxu0 %v899
      %1051 = vmatpush.msra.mxu0 %v897
      %1052 = vmatpush.msra.mxu0 %v895
      %1053 = vmatpush.msra.mxu0 %v778
      %1054 = vmatpush.msra.mxu0 %v776
      %1055 = vmatpush.msra.mxu0 %v774
      %1056 = vmatpush.msra.mxu0 %v772
      %1057 = vmatpush.msra.mxu0 %v729
      %1058 = vmatpush.msra.mxu0 %v727
      %1059 = vmatpush.msra.mxu0 %v725
      %1060 = vmatpush.msra.mxu0 %v723
      %1061 = vmatpush.msra.mxu0 %v347
      %1062 = vmatpush.msra.mxu0 %v345
      %1063 = vmatpush.msra.mxu0 %v343
      %1064 = vmatpush.msra.mxu0 %v341
      %1065 = vmatmul.f32.gmra.mxu0 %v912
      %v1066 = vpop.f32.mrf.mxu0
      %v1067 = vadd.f32 %v1026, %v1066
      %1068 = vmatmul.f32.gmra.mxu0 %v915
      %v1069 = vpop.f32.mrf.mxu0
      %v1070 = vadd.f32 %v1029, %v1069
      %1071 = vmatmul.f32.gmra.mxu0 %v918
      %v1072 = vpop.f32.mrf.mxu0
      %v1073 = vadd.f32 %v1032, %v1072
      %1074 = vmatmul.f32.gmra.mxu0 %v921
      %v1075 = vpop.f32.mrf.mxu0
      %v1076 = vadd.f32 %v1035, %v1075
      %1077 = vmatmul.f32.gmra.mxu0 %v924
      %v1078 = vpop.f32.mrf.mxu0
      %v1079 = vadd.f32 %v1038, %v1078
      %1080 = vmatmul.f32.gmra.mxu0 %v927
      %v1081 = vpop.f32.mrf.mxu0
      %v1082 = vadd.f32 %v1041, %v1081
      %1083 = vmatmul.f32.gmra.mxu0 %v930
      %v1084 = vpop.f32.mrf.mxu0
      %v1085 = vadd.f32 %v1044, %v1084
      %1086 = vmatmul.f32.gmra.mxu0 %v933
      %v1087 = vpop.f32.mrf.mxu0
      %v1088 = vadd.f32 %v1047, %v1087
      %1089 = vdwg.mxu0
      %1090 = vmatpush.msra.mxu0 0.0
      %1091 = vmatpush.msra.mxu0 0.0
      %1092 = vmatpush.msra.mxu0 0.0
      %1093 = vmatpush.msra.mxu0 0.0
      %1094 = vmatpush.msra.mxu0 0.0
      %1095 = vmatpush.msra.mxu0 0.0
      %1096 = vmatpush.msra.mxu0 0.0
      %1097 = vmatpush.msra.mxu0 0.0
      %1098 = vmatpush.msra.mxu0 0.0
      %1099 = vmatpush.msra.mxu0 0.0
      %1100 = vmatpush.msra.mxu0 0.0
      %1101 = vmatpush.msra.mxu0 0.0
      %1102 = vmatpush.msra.mxu0 %v827
      %1103 = vmatpush.msra.mxu0 %v825
      %1104 = vmatpush.msra.mxu0 %v823
      %1105 = vmatpush.msra.mxu0 %v821
      %1106 = vmatmul.f32.gmra.mxu0 %v985
      %v1107 = vpop.f32.mrf.mxu0
      %v1108 = vadd.f32 %v1067, %v1107
      %1109 = vmatmul.f32.gmra.mxu0 %v988
      %v1110 = vpop.f32.mrf.mxu0
      %v1111 = vadd.f32 %v1070, %v1110
      %1112 = vmatmul.f32.gmra.mxu0 %v991
      %v1113 = vpop.f32.mrf.mxu0
      %v1114 = vadd.f32 %v1073, %v1113
      %1115 = vmatmul.f32.gmra.mxu0 %v994
      %v1116 = vpop.f32.mrf.mxu0
      %v1117 = vadd.f32 %v1076, %v1116
      %1118 = vmatmul.f32.gmra.mxu0 %v997
      %v1119 = vpop.f32.mrf.mxu0
      %v1120 = vadd.f32 %v1079, %v1119
      %1121 = vmatmul.f32.gmra.mxu0 %v1000
      %v1122 = vpop.f32.mrf.mxu0
      %v1123 = vadd.f32 %v1082, %v1122
      %1124 = vmatmul.f32.gmra.mxu0 %v1003
      %v1125 = vpop.f32.mrf.mxu0
      %v1126 = vadd.f32 %v1085, %v1125
      %1127 = vmatmul.f32.gmra.mxu0 %v1006
      %v1128 = vpop.f32.mrf.mxu0
      %v1129 = vadd.f32 %v1088, %v1128
      %1130 = vdwg.mxu0
      %1131 = vmatpush.msra.mxu0 %v681
      %1132 = vmatpush.msra.mxu0 %v679
      %1133 = vmatpush.msra.mxu0 %v677
      %1134 = vmatpush.msra.mxu0 %v675
      %1135 = vmatpush.msra.mxu0 %v632
      %1136 = vmatpush.msra.mxu0 %v630
      %1137 = vmatpush.msra.mxu0 %v628
      %1138 = vmatpush.msra.mxu0 %v626
      %1139 = vmatpush.msra.mxu0 %v861
      %1140 = vmatpush.msra.mxu0 %v859
      %1141 = vmatpush.msra.mxu0 %v857
      %1142 = vmatpush.msra.mxu0 %v855
      %1143 = vmatpush.msra.mxu0 %v579
      %1144 = vmatpush.msra.mxu0 %v577
      %1145 = vmatpush.msra.mxu0 %v575
      %1146 = vmatpush.msra.mxu0 %v573
      %1147 = vmatmul.f32.gmra.mxu0 %v911
      %v1148 = vpop.f32.mrf.mxu0
      %v1149 = vadd.f32 %v946, %v1148
      %1150 = vmatmul.f32.gmra.mxu0 %v914
      %v1151 = vpop.f32.mrf.mxu0
      %v1152 = vadd.f32 %v951, %v1151
      %1153 = vmatmul.f32.gmra.mxu0 %v917
      %v1154 = vpop.f32.mrf.mxu0
      %v1155 = vadd.f32 %v956, %v1154
      %1156 = vmatmul.f32.gmra.mxu0 %v920
      %v1157 = vpop.f32.mrf.mxu0
      %v1158 = vadd.f32 %v961, %v1157
      %1159 = vmatmul.f32.gmra.mxu0 %v923
      %v1160 = vpop.f32.mrf.mxu0
      %v1161 = vadd.f32 %v966, %v1160
      %1162 = vmatmul.f32.gmra.mxu0 %v926
      %v1163 = vpop.f32.mrf.mxu0
      %v1164 = vadd.f32 %v971, %v1163
      %1165 = vmatmul.f32.gmra.mxu0 %v929
      %v1166 = vpop.f32.mrf.mxu0
      %v1167 = vadd.f32 %v976, %v1166
      %1168 = vmatmul.f32.gmra.mxu0 %v932
      %v1169 = vpop.f32.mrf.mxu0
      %v1170 = vadd.f32 %v981, %v1169
      %1171 = vdwg.mxu0
      %1172 = vmatpush.msra.mxu0 %v902
      %1173 = vmatpush.msra.mxu0 %v900
      %1174 = vmatpush.msra.mxu0 %v898
      %1175 = vmatpush.msra.mxu0 %v896
      %1176 = vmatpush.msra.mxu0 %v779
      %1177 = vmatpush.msra.mxu0 %v777
      %1178 = vmatpush.msra.mxu0 %v775
      %1179 = vmatpush.msra.mxu0 %v773
      %1180 = vmatpush.msra.mxu0 %v730
      %1181 = vmatpush.msra.mxu0 %v728
      %1182 = vmatpush.msra.mxu0 %v726
      %1183 = vmatpush.msra.mxu0 %v724
      %1184 = vmatpush.msra.mxu0 %v348
      %1185 = vmatpush.msra.mxu0 %v346
      %1186 = vmatpush.msra.mxu0 %v344
      %1187 = vmatpush.msra.mxu0 %v342
      %1188 = vmatmul.f32.gmra.mxu0 %v912
      %v1189 = vpop.f32.mrf.mxu0
      %v1190 = vadd.f32 %v1149, %v1189
      %1191 = vmatmul.f32.gmra.mxu0 %v915
      %v1192 = vpop.f32.mrf.mxu0
      %v1193 = vadd.f32 %v1152, %v1192
      %1194 = vmatmul.f32.gmra.mxu0 %v918
      %v1195 = vpop.f32.mrf.mxu0
      %v1196 = vadd.f32 %v1155, %v1195
      %1197 = vmatmul.f32.gmra.mxu0 %v921
      %v1198 = vpop.f32.mrf.mxu0
      %v1199 = vadd.f32 %v1158, %v1198
      %1200 = vmatmul.f32.gmra.mxu0 %v924
      %v1201 = vpop.f32.mrf.mxu0
      %v1202 = vadd.f32 %v1161, %v1201
      %1203 = vmatmul.f32.gmra.mxu0 %v927
      %v1204 = vpop.f32.mrf.mxu0
      %v1205 = vadd.f32 %v1164, %v1204
      %1206 = vmatmul.f32.gmra.mxu0 %v930
      %v1207 = vpop.f32.mrf.mxu0
      %v1208 = vadd.f32 %v1167, %v1207
      %1209 = vmatmul.f32.gmra.mxu0 %v933
      %v1210 = vpop.f32.mrf.mxu0
      %v1211 = vadd.f32 %v1170, %v1210
      %1212 = vdwg.mxu0
      %1213 = vmatpush.msra.mxu0 0.0
      %1214 = vmatpush.msra.mxu0 0.0
      %1215 = vmatpush.msra.mxu0 0.0
      %1216 = vmatpush.msra.mxu0 0.0
      %1217 = vmatpush.msra.mxu0 0.0
      %1218 = vmatpush.msra.mxu0 0.0
      %1219 = vmatpush.msra.mxu0 0.0
      %1220 = vmatpush.msra.mxu0 0.0
      %1221 = vmatpush.msra.mxu0 0.0
      %1222 = vmatpush.msra.mxu0 0.0
      %1223 = vmatpush.msra.mxu0 0.0
      %1224 = vmatpush.msra.mxu0 0.0
      %1225 = vmatpush.msra.mxu0 %v828
      %1226 = vmatpush.msra.mxu0 %v826
      %1227 = vmatpush.msra.mxu0 %v824
      %1228 = vmatpush.msra.mxu0 %v822
      %1229 = vmatmul.f32.gmra.mxu0 %v985
      %v1230 = vpop.f32.mrf.mxu0
      %v1231 = vadd.f32 %v1190, %v1230
      %1232 = vmatmul.f32.gmra.mxu0 %v988
      %v1233 = vpop.f32.mrf.mxu0
      %v1234 = vadd.f32 %v1193, %v1233
      %1235 = vmatmul.f32.gmra.mxu0 %v991
      %v1236 = vpop.f32.mrf.mxu0
      %v1237 = vadd.f32 %v1196, %v1236
      %1238 = vmatmul.f32.gmra.mxu0 %v994
      %v1239 = vpop.f32.mrf.mxu0
      %v1240 = vadd.f32 %v1199, %v1239
      %1241 = vmatmul.f32.gmra.mxu0 %v997
      %v1242 = vpop.f32.mrf.mxu0
      %v1243 = vadd.f32 %v1202, %v1242
      %1244 = vmatmul.f32.gmra.mxu0 %v1000
      %v1245 = vpop.f32.mrf.mxu0
      %v1246 = vadd.f32 %v1205, %v1245
      %1247 = vmatmul.f32.gmra.mxu0 %v1003
      %v1248 = vpop.f32.mrf.mxu0
      %v1249 = vadd.f32 %v1208, %v1248
      %1250 = vmatmul.f32.gmra.mxu0 %v1006
      %v1251 = vpop.f32.mrf.mxu0
      %v1252 = vadd.f32 %v1211, %v1251
      %1253 = vdwg.mxu0
      %v1254 = vand.u32 2147483647, %v1108
      %v1255 = vand.u32 2147483647, %v1231
      %v1256 = vand.u32 2147483647, %v1111
      %v1257 = vand.u32 2147483647, %v1234
      %v1258 = vand.u32 2147483647, %v1114
      %v1259 = vand.u32 2147483647, %v1237
      %v1260 = vand.u32 2147483647, %v1117
      %v1261 = vand.u32 2147483647, %v1240
      %v1262 = vand.u32 2147483647, %v1120
      %v1263 = vand.u32 2147483647, %v1243
      %v1264 = vand.u32 2147483647, %v1123
      %v1265 = vand.u32 2147483647, %v1246
      %v1266 = vand.u32 2147483647, %v1126
      %v1267 = vand.u32 2147483647, %v1249
      %v1268 = vand.u32 2147483647, %v1129
      %v1269 = vand.u32 2147483647, %v1252
      %v1270 = vadd.f32 %v1254, %v1262
      %v1271 = vadd.f32 %v1255, %v1263
      %v1272 = vadd.f32 %v1256, %v1264
      %v1273 = vadd.f32 %v1257, %v1265
      %v1274 = vadd.f32 %v1258, %v1266
      %v1275 = vadd.f32 %v1259, %v1267
      %v1276 = vadd.f32 %v1260, %v1268
      %v1277 = vadd.f32 %v1261, %v1269
      %v1278 = vadd.f32 %v1270, %v1271
      %1279 = vadd.xlane.f32.xlu0 %v1278
      %v1280 = vpop.xlane.xlu0 %1279
      %v1281 = vadd.f32 %v1272, %v1273
      %1282 = vadd.xlane.f32.xlu0 %v1281
      %v1283 = vpop.xlane.xlu0 %1282
      %v1284 = vadd.f32 %v1274, %v1275
      %1285 = vadd.xlane.f32.xlu0 %v1284
      %v1286 = vpop.xlane.xlu0 %1285
      %v1287 = vadd.f32 %v1276, %v1277
      %1288 = vadd.xlane.f32.xlu0 %v1287
      %v1289 = vpop.xlane.xlu0 %1288
      %v1290 = vmul.f32 %v1280, %v375
      %v1291 = vmul.f32 %v1283, %v375
      %v1292 = vmul.f32 %v1286, %v375
      %v1293 = vmul.f32 %v1289, %v375
      %v1294 = vmul.f32 %v279, %v1290
      %v1295 = vmul.f32 %v280, %v1291
      %v1296 = vmul.f32 %v281, %v1292
      %v1297 = vmul.f32 %v282, %v1293
      %v1298 = vsel %vm384, %v1294, 0.0
      %v1299 = vsel %vm384, %v1295, 0.0
      %v1300 = vadd.f32 %v1298, %v1299
      %v1301 = vsel %vm384, %v1296, 0.0
      %v1302 = vadd.f32 %v1300, %v1301
      %v1303 = vsel %vm384, %v1297, 0.0
      %v1304 = vadd.f32 %v1302, %v1303
      %v1305 = vrot.slane %v1304, 4
      %v1306 = vadd.f32 %v1304, %v1305
      %v1307 = vrot.slane %v1306, 2
      %v1308 = vadd.f32 %v1306, %v1307
      %v1309 = vrot.slane %v1308, 1
      %v1310 = vadd.f32 %v1308, %v1309
      %v1311 = vadd.f32 %v1310, %v283
      %v1312 = vmax.f32 %v1311, 0.0
      %v1313 = vperm.slane %v1312, 0
      %v1314 = vmul.f32 %v284, %v1313
      %v1315 = vmul.f32 %v285, %v1313
      %v1316 = vmul.f32 %v286, %v1313
      %v1317 = vmul.f32 %v287, %v1313
      %v1318 = vsel %vm384, %v1314, 0.0
      %1319 = vadd.xlane.f32.xlu0 %v1318
      %v1320 = vpop.xlane.xlu0 %1319
      %v1321 = vsel %vm384, %v1315, 0.0
      %1322 = vadd.xlane.f32.xlu0 %v1321
      %v1323 = vpop.xlane.xlu0 %1322
      %v1324 = vsel %vm384, %v1316, 0.0
      %1325 = vadd.xlane.f32.xlu0 %v1324
      %v1326 = vpop.xlane.xlu0 %1325
      %v1327 = vsel %vm384, %v1317, 0.0
      %1328 = vadd.xlane.f32.xlu0 %v1327
      %v1329 = vpop.xlane.xlu0 %1328
      %v1330 = vadd.f32 %v1320, %v288
      %v1331 = vadd.f32 %v1323, %v289
      %v1332 = vadd.f32 %v1326, %v290
      %v1333 = vadd.f32 %v1329, %v291
      %v1334 = vxor.u32 %v1330, 2147483648
      %v1335 = vxor.u32 %v1331, 2147483648
      %v1336 = vxor.u32 %v1332, 2147483648
      %v1337 = vxor.u32 %v1333, 2147483648
      %v1338 = vmul.f32 %v1334, 1.442695
      %v1339 = vpow.pop %v1338
      %v1340 = vmul.f32 %v1335, 1.442695
      %v1341 = vpow.pop %v1340
      %v1342 = vmul.f32 %v1336, 1.442695
      %v1343 = vpow.pop %v1342
      %v1344 = vmul.f32 %v1337, 1.442695
      %v1345 = vpow.pop %v1344
      %v1346 = vadd.f32 %v1339, 1.0
      %v1347 = vadd.f32 %v1341, 1.0
      %v1348 = vadd.f32 %v1343, 1.0
      %v1349 = vadd.f32 %v1345, 1.0
      %v1350 = vrcp.pop %v1346
      %v1351 = vmul.f32 %v1346, %v1350
      %v1352 = vsub.f32 1.0, %v1351
      %v1353 = vmul.f32 %v1350, %v1352
      %v1354 = vadd.f32 %v1350, %v1353
      %vm1355 = vweird.f32 %v1346
      %vm1356 = vweird.f32 %v1350
      %vm1357 = vmor %vm1355, %vm1356
      %v1358 = vsel %vm1357, %v1350, %v1354
      %v1359 = vand.u32 2147483647, %v1346
      %vm1360 = vcmp.eq.f32.partialorder %v1359, 8.507059e+37
      %v1361 = vand.u32 %v1346, 2147483648
      %v1362 = vor.u32 1.1754944e-38, %v1361
      %v1363 = vsel %vm1360, %v1362, %v1358
      %v1364 = vmul.f32 1.0, %v1363
      %v1365 = vrcp.pop %v1347
      %v1366 = vmul.f32 %v1347, %v1365
      %v1367 = vsub.f32 1.0, %v1366
      %v1368 = vmul.f32 %v1365, %v1367
      %v1369 = vadd.f32 %v1365, %v1368
      %vm1370 = vweird.f32 %v1347
      %vm1371 = vweird.f32 %v1365
      %vm1372 = vmor %vm1370, %vm1371
      %v1373 = vsel %vm1372, %v1365, %v1369
      %v1374 = vand.u32 2147483647, %v1347
      %vm1375 = vcmp.eq.f32.partialorder %v1374, 8.507059e+37
      %v1376 = vand.u32 %v1347, 2147483648
      %v1377 = vor.u32 1.1754944e-38, %v1376
      %v1378 = vsel %vm1375, %v1377, %v1373
      %v1379 = vmul.f32 1.0, %v1378
      %v1380 = vrcp.pop %v1348
      %v1381 = vmul.f32 %v1348, %v1380
      %v1382 = vsub.f32 1.0, %v1381
      %v1383 = vmul.f32 %v1380, %v1382
      %v1384 = vadd.f32 %v1380, %v1383
      %vm1385 = vweird.f32 %v1348
      %vm1386 = vweird.f32 %v1380
      %vm1387 = vmor %vm1385, %vm1386
      %v1388 = vsel %vm1387, %v1380, %v1384
      %v1389 = vand.u32 2147483647, %v1348
      %vm1390 = vcmp.eq.f32.partialorder %v1389, 8.507059e+37
      %v1391 = vand.u32 %v1348, 2147483648
      %v1392 = vor.u32 1.1754944e-38, %v1391
      %v1393 = vsel %vm1390, %v1392, %v1388
      %v1394 = vmul.f32 1.0, %v1393
      %v1395 = vrcp.pop %v1349
      %v1396 = vmul.f32 %v1349, %v1395
      %v1397 = vsub.f32 1.0, %v1396
      %v1398 = vmul.f32 %v1395, %v1397
      %v1399 = vadd.f32 %v1395, %v1398
      %vm1400 = vweird.f32 %v1349
      %vm1401 = vweird.f32 %v1395
      %vm1402 = vmor %vm1400, %vm1401
      %v1403 = vsel %vm1402, %v1395, %v1399
      %v1404 = vand.u32 2147483647, %v1349
      %vm1405 = vcmp.eq.f32.partialorder %v1404, 8.507059e+37
      %v1406 = vand.u32 %v1349, 2147483648
      %v1407 = vor.u32 1.1754944e-38, %v1406
      %v1408 = vsel %vm1405, %v1407, %v1403
      %v1409 = vmul.f32 1.0, %v1408
      %1411 = vset.pattern.permute.xlu0 0
      %1412 = vperm.xlu0 %1411, %v1364
      %v1413 = vpop.permute.xlu0 %1412
      %1416 = vset.pattern.permute.xlu0 0
      %1417 = vperm.xlu0 %1416, %v1379
      %v1418 = vpop.permute.xlu0 %1417
      %1421 = vset.pattern.permute.xlu0 0
      %1422 = vperm.xlu0 %1421, %v1394
      %v1423 = vpop.permute.xlu0 %1422
      %1426 = vset.pattern.permute.xlu0 0
      %1427 = vperm.xlu0 %1426, %v1409
      %v1428 = vpop.permute.xlu0 %1427
      %v1430 = vmul.f32 %v1270, %v1413
      %v1431 = vmul.f32 %v1271, %v1413
      %v1432 = vmul.f32 %v1272, %v1418
      %v1433 = vmul.f32 %v1273, %v1418
      %v1434 = vmul.f32 %v1274, %v1423
      %v1435 = vmul.f32 %v1275, %v1423
      %v1436 = vmul.f32 %v1276, %v1428
      %v1437 = vmul.f32 %v1277, %v1428
      %1446 = vrot.lane.b32.xlu0 %v1430, 17
      %v1447 = vpop.permute.xlu0 %1446
      %1448 = vrot.lane.b32.xlu0 %v1431, 17
      %v1449 = vpop.permute.xlu0 %1448
      %1450 = vrot.lane.b32.xlu0 %v1432, 17
      %v1451 = vpop.permute.xlu0 %1450
      %1452 = vrot.lane.b32.xlu0 %v1433, 17
      %v1453 = vpop.permute.xlu0 %1452
      %1454 = vrot.lane.b32.xlu0 %v1434, 17
      %v1455 = vpop.permute.xlu0 %1454
      %1456 = vrot.lane.b32.xlu0 %v1435, 17
      %v1457 = vpop.permute.xlu0 %1456
      %1458 = vrot.lane.b32.xlu0 %v1436, 17
      %v1459 = vpop.permute.xlu0 %1458
      %1460 = vrot.lane.b32.xlu0 %v1437, 17
      %v1461 = vpop.permute.xlu0 %1460
      %vm1462 = vcmask 138240
      %v1463 = vsel %vm1462, %v1447, %v1449
      %v1464 = vsel %vm1462, %v1451, %v1453
      %v1465 = vsel %vm1462, %v1455, %v1457
      %v1466 = vsel %vm1462, %v1459, %v1461
      %v1479 = vadd.f32 %v517, %v1447
      %v1480 = vadd.f32 %v518, %v1463
      %v1481 = vadd.f32 %v519, %v1449
      %v1482 = vadd.f32 %v520, %v1451
      %v1483 = vadd.f32 %v521, %v1464
      %v1484 = vadd.f32 %v522, %v1453
      %v1485 = vadd.f32 %v523, %v1455
      %v1486 = vadd.f32 %v524, %v1465
      %v1487 = vadd.f32 %v525, %v1457
      %v1488 = vadd.f32 %v526, %v1459
      %v1489 = vadd.f32 %v527, %v1466
      %v1490 = vadd.f32 %v528, %v1461
      %1503 = vrot.lane.b32.xlu0 %v1479, 111
      %v1504 = vpop.permute.xlu0 %1503
      %1505 = vrot.lane.b32.xlu0 %v1480, 111
      %v1506 = vpop.permute.xlu0 %1505
      %1507 = vrot.lane.b32.xlu0 %v1481, 111
      %v1508 = vpop.permute.xlu0 %1507
      %1509 = vrot.lane.b32.xlu0 %v1482, 111
      %v1510 = vpop.permute.xlu0 %1509
      %1511 = vrot.lane.b32.xlu0 %v1483, 111
      %v1512 = vpop.permute.xlu0 %1511
      %1513 = vrot.lane.b32.xlu0 %v1484, 111
      %v1514 = vpop.permute.xlu0 %1513
      %1515 = vrot.lane.b32.xlu0 %v1485, 111
      %v1516 = vpop.permute.xlu0 %1515
      %1517 = vrot.lane.b32.xlu0 %v1486, 111
      %v1518 = vpop.permute.xlu0 %1517
      %1519 = vrot.lane.b32.xlu0 %v1487, 111
      %v1520 = vpop.permute.xlu0 %1519
      %1521 = vrot.lane.b32.xlu0 %v1488, 111
      %v1522 = vpop.permute.xlu0 %1521
      %1523 = vrot.lane.b32.xlu0 %v1489, 111
      %v1524 = vpop.permute.xlu0 %1523
      %1525 = vrot.lane.b32.xlu0 %v1490, 111
      %v1526 = vpop.permute.xlu0 %1525
      %v1527 = vsel %vm340, %v1504, %v1506
      %v1528 = vsel %vm340, %v1506, %v1508
      %v1529 = vsel %vm340, %v1510, %v1512
      %v1530 = vsel %vm340, %v1512, %v1514
      %v1531 = vsel %vm340, %v1516, %v1518
      %v1532 = vsel %vm340, %v1518, %v1520
      %v1533 = vsel %vm340, %v1522, %v1524
      %v1534 = vsel %vm340, %v1524, %v1526
      %1543 = vst [vmem:[%s278] sm:$0xff] %v1527
      %1544 = vst [vmem:[%s278 + $0x8] sm:$0xff] %v1528
      %1545 = vst [vmem:[%s278 + $0x10] sm:$0xff] %v1529
      %1546 = vst [vmem:[%s278 + $0x18] sm:$0xff] %v1530
      %1547 = vst [vmem:[%s278 + $0x20] sm:$0xff] %v1531
      %1548 = vst [vmem:[%s278 + $0x28] sm:$0xff] %v1532
      %1549 = vst [vmem:[%s278 + $0x30] sm:$0xff] %v1533
      %1550 = vst [vmem:[%s278 + $0x38] sm:$0xff] %v1534
      %p1551 = scmp.lt.s32.totalorder %s18, 1
      %s1552 = scalar_select %p1551, %s18, 1
      %s1553 = smul.addr %s1552, 8
      %s1554 = smul.addr %s1553, 8
      %s1555 = scalar_lea.vmem %s7, %s1554
      // Predicated region
      $region49: #{res_grad_attention.1} parent=47 // pred_check
        %p1556 = pneg %p188
      $region50: #{res_grad_attention.1} parent=47 // pred_check_branch
        %1558 = sbr.rel (%p1556) target = $region52
      $region51: #{res_grad_attention.1} parent=47 // pred_region
        _
      $region52: #{res_grad_attention.1} parent=47 // pred_fallthru
        _
    $region48: #{res_grad_attention.1} parent=5 // pred_fallthru
      _
    %p1559 = scmp.le.s32.totalorder 2, %s13
    // Predicated region
    $region53: #{res_grad_attention.1} parent=5 // pred_check
      %p1560 = pneg %p1559
    $region54: #{res_grad_attention.1} parent=5 // pred_check_branch
      %1562 = sbr.rel (%p1560) target = $region56
    $region55: #{res_grad_attention.1} parent=5 // pred_region
      %s1563 = ssub.s32 %s13, 2
      // Predicated region
      $region57: #{res_grad_attention.1} parent=55 // pred_check
        %p1564 = pneg %p194
      $region58: #{res_grad_attention.1} parent=55 // pred_check_branch
        %1566 = sbr.rel (%p1564) target = $region60
      $region59: #{res_grad_attention.1} parent=55 // pred_region
        %p1567 = scmp.lt.s32.totalorder %s19, 1
        %s1568 = scalar_select %p1567, %s19, 1
        %s1569 = smul.addr %s1568, 8
        %s1570 = smul.addr %s1569, 8
        %s1571 = scalar_lea.vmem %s7, %s1570
      $region60: #{res_grad_attention.1} parent=55 // pred_fallthru
        _
    $region56: #{res_grad_attention.1} parent=5 // pred_fallthru
      _
  $region6: #{res_grad_attention.1} parent=0 // loop_footer
    %s17 = sadd.s32 1, %s13
  $region7: #{res_grad_attention.1} parent=0 // loop_footer_branch
    %12 = sbr.rel target = $region3
  $region8: #{res_grad_attention.1} parent=0 // loop_exit
    _

</llo_original>
